<compile_context>
chip_gen: v7x
topology: tpu7x:2x2x1
jax: 0.10.0
libtpu: 0.0.40
codegen_flags: <defaults>
</compile_context>

<pallas_src>
import jax
import jax.numpy as jnp
from jax.experimental import pallas as pl
from jax.experimental.pallas import tpu as pltpu


# ----------------------------------------------------------------------------
# Pallas kernel: fused chain of 1x1 convs (W_t @ h matmuls) + ReLU, one branch.
# ----------------------------------------------------------------------------
def make_branch_kernel(num_layers):
    def kernel(*refs):
        # refs = (x_ref, w_0..w_{L-1}, b_0..b_{L-1}, out_ref)
        x_ref = refs[0]
        w_refs = refs[1:1 + num_layers]
        b_refs = refs[1 + num_layers:1 + 2 * num_layers]
        out_ref = refs[-1]

        h = x_ref[...].astype(jnp.bfloat16)                    # [C, TM], bf16 MXU operand
        for i in range(num_layers):
            acc = jnp.dot(w_refs[i][...], h,                   # [c_out, TM], f32 acc
                          preferred_element_type=jnp.float32)
            acc = acc + b_refs[i][...]                         # bias [c_out, 1] -> lane bcast
            if i != num_layers - 1:                            # ReLU after all but last conv
                h = jnp.maximum(acc, 0.0).astype(jnp.bfloat16)
            else:
                out_ref[...] = acc.astype(out_ref.dtype)       # lane-dense [c_out, TM] store
    return kernel


# ----------------------------------------------------------------------------
# Wrapper: one pallas_call per branch, all same-branch levels fused along M.
# ----------------------------------------------------------------------------
def branch_apply_grouped(xs, weights, biases):
    """Apply a DAImgHead branch to a list of NCHW maps sharing its weights."""
    N, C = int(xs[0].shape[0]), int(xs[0].shape[1])
    hw_list = [int(x.shape[2] * x.shape[3]) for x in xs]
    # NCHW -> (N, C, H*W) is a pure reshape (no transpose); concat levels on M.
    x3d = jnp.concatenate([x.reshape(N, C, -1) for x in xs], axis=-1)
    M = sum(hw_list)
    num_layers = len(weights)
    c_out = int(weights[-1].shape[0])

    # Spatial tiling: small total extents run as one full-extent block (block
    # shape equal to full dims satisfies the (8,128) rule); larger maps are
    # padded to a multiple of TM=512 (lane-aligned, VMEM-bounded on v7x).
    if M <= 1024:
        TM, M_pad = M, M
    else:
        TM = 512
        M_pad = int(pl.cdiv(M, TM)) * TM
        if M_pad != M:
            x3d = jnp.pad(x3d, ((0, 0), (0, 0), (0, M_pad - M)))
    num_m = M_pad // TM
    grid = (N, num_m)

    in_specs = [pl.BlockSpec((None, C, TM), lambda n, m: (n, 0, m))]
    for w in weights:   # constant index_map -> weights stay VMEM-resident
        in_specs.append(pl.BlockSpec(w.shape, lambda n, m: (0, 0)))
    for b in biases:
        in_specs.append(pl.BlockSpec(b.shape, lambda n, m: (0, 0)))
    out_spec = pl.BlockSpec((None, c_out, TM), lambda n, m: (n, 0, m))

    out_dtype = xs[0].dtype
    flops = 2 * N * M_pad * sum(int(w.shape[0]) * int(w.shape[1]) for w in weights)
    bytes_accessed = int(
        x3d.size * x3d.dtype.itemsize
        + sum(int(w.size) * w.dtype.itemsize for w in weights)
        + sum(int(b.size) * b.dtype.itemsize for b in biases)
        + N * M_pad * c_out * jnp.dtype(out_dtype).itemsize)

    y3d = pl.pallas_call(
        make_branch_kernel(num_layers),
        out_shape=jax.ShapeDtypeStruct((N, c_out, M_pad), out_dtype),
        grid=grid,
        in_specs=in_specs,
        out_specs=out_spec,
        compiler_params=pltpu.CompilerParams(
            dimension_semantics=("parallel", "parallel"),
            vmem_limit_bytes=48 * 1024 * 1024),
        cost_estimate=pl.CostEstimate(
            flops=flops, transcendentals=0, bytes_accessed=bytes_accessed),
    )(x3d, *weights, *biases)

    # Split back per level; (N, c_out, H*W) -> NCHW is again a pure reshape.
    outs, off = [], 0
    for x, hw in zip(xs, hw_list):
        h_, w_ = int(x.shape[2]), int(x.shape[3])
        outs.append(y3d[:, :, off:off + hw].reshape(N, c_out, h_, w_))
        off += hw
    return outs


# ----------------------------------------------------------------------------
# DAImgHead parameters (deterministic synthetic init, shapes from __init__).
# ----------------------------------------------------------------------------
# branch_2048: in -> 1024 -> ConvBlock([1024,512,128,32,8,1])
# branch_1024: 1024 -> 512 -> ConvBlock([512,256,64,16,4,1])
# branch_other: 512 -> 256 -> ConvBlock([256,128,32,8,1])
BRANCH_CHAINS = {
    2048: [2048, 1024, 512, 128, 32, 8, 1],
    1024: [1024, 512, 256, 64, 16, 4, 1],
    "other": [512, 256, 128, 32, 8, 1],
}


def init_branch_params(key, chain, w_dtype=jnp.bfloat16):
    """1x1 conv weights stored transposed as [c_out, c_in] (bf16 MXU operands);
    biases as [c_out, 1] f32 (broadcast over the lane/spatial axis)."""
    weights, biases = [], []
    for i, (cin, cout) in enumerate(zip(chain[:-1], chain[1:])):
        key, wk = jax.random.split(key)
        # First conv mirrors torch.nn.init.normal_(std=0.001), bias = 0.
        std = 0.001 if i == 0 else (1.0 / cin) ** 0.5
        w = (jax.random.normal(wk, (cout, cin), jnp.float32) * std).astype(w_dtype)
        b = jnp.zeros((cout, 1), jnp.float32)
        weights.append(w)
        biases.append(b)
    return weights, biases


def init_da_img_head_params(key, channel_counts):
    params = {}
    for c in channel_counts:
        branch_key = c if c in (2048, 1024) else "other"
        if branch_key not in params:
            key, sub = jax.random.split(key)
            chain = list(BRANCH_CHAINS[branch_key])
            if branch_key == 2048:
                chain[0] = c  # in_channels of branch_2048 is the input channel count
            params[branch_key] = init_branch_params(sub, chain)
    return params


# ----------------------------------------------------------------------------
# Forward-pass semantics of the module's image-level DA path.
# ----------------------------------------------------------------------------
def grl_img(x):
    # GradientScalarLayer is identity in the forward pass (scales gradients only).
    return x


def da_img_head_forward(img_features, params):
    # Group levels that share a branch's weights -> one pallas_call per branch.
    groups = {}
    for idx, fea in enumerate(img_features):
        c = int(fea.shape[1])
        branch_key = c if c in (2048, 1024) else "other"
        groups.setdefault(branch_key, []).append(idx)

    outs = [None] * len(img_features)
    for branch_key, idxs in groups.items():
        w, b = params[branch_key]
        xs = [img_features[i] for i in idxs]
        ys = branch_apply_grouped(xs, w, b)
        for i, y in zip(idxs, ys):
            outs[i] = y
    return outs


def domain_adaptation_triplet_forward(img_features, params, training=False):
    """Forward of DomainAdaptationModule_triplet (image-level DA component).

    Returns the DA image logit maps produced by imghead(grl_img(features)),
    which is the tensor compute of DA_Img_component.
    """
    # TODO(synk): loss_evaluator.da_img_loss / triplet & instance / consistency
    # losses depend on undefined external modules and are not translated.
    if not training:
        return {}
    img_grl_fea = [grl_img(f) for f in img_features]
    da_img_features = da_img_head_forward(img_grl_fea, params)
    return {"da_img_features": da_img_features}


# ----------------------------------------------------------------------------
# Pure-JAX reference (mirrors the kernel's bf16-operand / f32-accumulate math).
# ----------------------------------------------------------------------------
def branch_ref(x_nchw, weights, biases):
    N, C, H, W = x_nchw.shape
    h = x_nchw.reshape(N, C, H * W)
    num_layers = len(weights)
    for i, (w, b) in enumerate(zip(weights, biases)):
        h = jnp.einsum("oc,ncm->nom", w, h.astype(jnp.bfloat16),
                       preferred_element_type=jnp.float32)
        h = h + b[None]
        if i != num_layers - 1:
            h = jnp.maximum(h, 0.0)
    c_out = weights[-1].shape[0]
    return h.reshape(N, c_out, H, W).astype(x_nchw.dtype)


if __name__ == "__main__":
    key = jax.random.PRNGKey(0)
    k_feat0, k_feat1, k_params = jax.random.split(key, 3)

    # Two FPN-style feature maps with 512 channels -> both route to branch_other
    # and are fused into a single pallas_call.
    img_features = [
        jax.random.normal(k_feat0, (2, 512, 8, 8), dtype=jnp.float32),
        jax.random.normal(k_feat1, (2, 512, 4, 4), dtype=jnp.float32),
    ]

    params = init_da_img_head_params(
        k_params, [int(f.shape[1]) for f in img_features])

    # Training-mode forward (image-level DA component hot path).
    out = domain_adaptation_triplet_forward(img_features, params, training=True)
    da_img_features = [jax.block_until_ready(o) for o in out["da_img_features"]]

    # Check against pure-JAX reference.
    for fea, got in zip(img_features, da_img_features):
        w, b = params["other"]
        want = branch_ref(fea, w, b)
        assert got.shape == (fea.shape[0], 1, fea.shape[2], fea.shape[3])
        assert jnp.allclose(got, want, rtol=1e-2, atol=1e-4), "mismatch vs reference"

    # Eval-mode forward returns an empty dict, matching the PyTorch module.
    assert domain_adaptation_triplet_forward(img_features, params, training=False) == {}

    print("KERNEL_OK")
</pallas_src>

<mosaic_0001>
module attributes {stable_mosaic.version = 11 : i64} {
  func.func @kernel(%arg0: i32, %arg1: i32, %arg2: memref<1x512x80xf32, #tpu.memory_space<vmem>>, %arg3: memref<256x512xbf16, #tpu.memory_space<vmem>>, %arg4: memref<128x256xbf16, #tpu.memory_space<vmem>>, %arg5: memref<32x128xbf16, #tpu.memory_space<vmem>>, %arg6: memref<8x32xbf16, #tpu.memory_space<vmem>>, %arg7: memref<1x8xbf16, #tpu.memory_space<vmem>>, %arg8: memref<256x1xf32, #tpu.memory_space<vmem>>, %arg9: memref<128x1xf32, #tpu.memory_space<vmem>>, %arg10: memref<32x1xf32, #tpu.memory_space<vmem>>, %arg11: memref<8x1xf32, #tpu.memory_space<vmem>>, %arg12: memref<1x1xf32, #tpu.memory_space<vmem>>, %arg13: memref<1x1x80xf32, #tpu.memory_space<vmem>>) attributes {dimension_semantics = [#tpu.dimension_semantics<parallel>, #tpu.dimension_semantics<parallel>], iteration_bounds = array<i64: 2, 1>, scalar_prefetch = 0 : i64, scratch_operands = 0 : i64, tpu.core_type = #tpu.core_type<tc>, window_params = [{transform_indices = @transform_0, window_bounds = array<i64: 1, 512, 80>}, {pipeline_mode = #tpu.pipeline_mode<synchronous>, transform_indices = @transform_1, window_bounds = array<i64: 256, 512>}, {pipeline_mode = #tpu.pipeline_mode<synchronous>, transform_indices = @transform_2, window_bounds = array<i64: 128, 256>}, {pipeline_mode = #tpu.pipeline_mode<synchronous>, transform_indices = @transform_3, window_bounds = array<i64: 32, 128>}, {pipeline_mode = #tpu.pipeline_mode<synchronous>, transform_indices = @transform_4, window_bounds = array<i64: 8, 32>}, {pipeline_mode = #tpu.pipeline_mode<synchronous>, transform_indices = @transform_5, window_bounds = array<i64: 1, 8>}, {pipeline_mode = #tpu.pipeline_mode<synchronous>, transform_indices = @transform_6, window_bounds = array<i64: 256, 1>}, {pipeline_mode = #tpu.pipeline_mode<synchronous>, transform_indices = @transform_7, window_bounds = array<i64: 128, 1>}, {pipeline_mode = #tpu.pipeline_mode<synchronous>, transform_indices = @transform_8, window_bounds = array<i64: 32, 1>}, {pipeline_mode = #tpu.pipeline_mode<synchronous>, transform_indices = @transform_9, window_bounds = array<i64: 8, 1>}, {pipeline_mode = #tpu.pipeline_mode<synchronous>, transform_indices = @transform_10, window_bounds = array<i64: 1, 1>}, {transform_indices = @transform_11, window_bounds = array<i64: 1, 1, 80>}]} {
    %c0 = arith.constant 0 : index
    %c0_0 = arith.constant 0 : index
    %c0_1 = arith.constant 0 : index
    %0 = vector.load %arg2[%c0, %c0_0, %c0_1] : memref<1x512x80xf32, #tpu.memory_space<vmem>>, vector<1x512x80xf32>
    %1 = vector.shape_cast %0 : vector<1x512x80xf32> to vector<512x80xf32>
    %2 = arith.truncf %1 : vector<512x80xf32> to vector<512x80xbf16>
    %c0_2 = arith.constant 0 : index
    %c0_3 = arith.constant 0 : index
    %3 = vector.load %arg3[%c0_2, %c0_3] : memref<256x512xbf16, #tpu.memory_space<vmem>>, vector<256x512xbf16>
    %cst = arith.constant dense<0.000000e+00> : vector<256x80xf32>
    %4 = tpu.matmul %3, %2, %cst {dimension_numbers = #tpu.dot_dimension_numbers<[1], [0], [0], [1], [0, 0, 1, 1], [], []>} : vector<256x512xbf16>, vector<512x80xbf16>, vector<256x80xf32> -> vector<256x80xf32>
    %c0_4 = arith.constant 0 : index
    %c0_5 = arith.constant 0 : index
    %5 = vector.load %arg8[%c0_4, %c0_5] : memref<256x1xf32, #tpu.memory_space<vmem>>, vector<256x1xf32>
    %6 = vector.broadcast %5 : vector<256x1xf32> to vector<256x80xf32>
    %7 = arith.addf %4, %6 : vector<256x80xf32>
    %cst_6 = arith.constant 0.000000e+00 : f32
    %8 = vector.broadcast %cst_6 : f32 to vector<256x80xf32>
    %9 = arith.maximumf %7, %8 : vector<256x80xf32>
    %10 = arith.truncf %9 : vector<256x80xf32> to vector<256x80xbf16>
    %c0_7 = arith.constant 0 : index
    %c0_8 = arith.constant 0 : index
    %11 = vector.load %arg4[%c0_7, %c0_8] : memref<128x256xbf16, #tpu.memory_space<vmem>>, vector<128x256xbf16>
    %cst_9 = arith.constant dense<0.000000e+00> : vector<128x80xf32>
    %12 = tpu.matmul %11, %10, %cst_9 {dimension_numbers = #tpu.dot_dimension_numbers<[1], [0], [0], [1], [0, 0, 1, 1], [], []>} : vector<128x256xbf16>, vector<256x80xbf16>, vector<128x80xf32> -> vector<128x80xf32>
    %c0_10 = arith.constant 0 : index
    %c0_11 = arith.constant 0 : index
    %13 = vector.load %arg9[%c0_10, %c0_11] : memref<128x1xf32, #tpu.memory_space<vmem>>, vector<128x1xf32>
    %14 = vector.broadcast %13 : vector<128x1xf32> to vector<128x80xf32>
    %15 = arith.addf %12, %14 : vector<128x80xf32>
    %cst_12 = arith.constant 0.000000e+00 : f32
    %16 = vector.broadcast %cst_12 : f32 to vector<128x80xf32>
    %17 = arith.maximumf %15, %16 : vector<128x80xf32>
    %18 = arith.truncf %17 : vector<128x80xf32> to vector<128x80xbf16>
    %c0_13 = arith.constant 0 : index
    %c0_14 = arith.constant 0 : index
    %19 = vector.load %arg5[%c0_13, %c0_14] : memref<32x128xbf16, #tpu.memory_space<vmem>>, vector<32x128xbf16>
    %cst_15 = arith.constant dense<0.000000e+00> : vector<32x80xf32>
    %20 = tpu.matmul %19, %18, %cst_15 {dimension_numbers = #tpu.dot_dimension_numbers<[1], [0], [0], [1], [0, 0, 1, 1], [], []>} : vector<32x128xbf16>, vector<128x80xbf16>, vector<32x80xf32> -> vector<32x80xf32>
    %c0_16 = arith.constant 0 : index
    %c0_17 = arith.constant 0 : index
    %21 = vector.load %arg10[%c0_16, %c0_17] : memref<32x1xf32, #tpu.memory_space<vmem>>, vector<32x1xf32>
    %22 = vector.broadcast %21 : vector<32x1xf32> to vector<32x80xf32>
    %23 = arith.addf %20, %22 : vector<32x80xf32>
    %cst_18 = arith.constant 0.000000e+00 : f32
    %24 = vector.broadcast %cst_18 : f32 to vector<32x80xf32>
    %25 = arith.maximumf %23, %24 : vector<32x80xf32>
    %26 = arith.truncf %25 : vector<32x80xf32> to vector<32x80xbf16>
    %c0_19 = arith.constant 0 : index
    %c0_20 = arith.constant 0 : index
    %27 = vector.load %arg6[%c0_19, %c0_20] : memref<8x32xbf16, #tpu.memory_space<vmem>>, vector<8x32xbf16>
    %cst_21 = arith.constant dense<0.000000e+00> : vector<8x80xf32>
    %28 = tpu.matmul %27, %26, %cst_21 {dimension_numbers = #tpu.dot_dimension_numbers<[1], [0], [0], [1], [0, 0, 1, 1], [], []>} : vector<8x32xbf16>, vector<32x80xbf16>, vector<8x80xf32> -> vector<8x80xf32>
    %c0_22 = arith.constant 0 : index
    %c0_23 = arith.constant 0 : index
    %29 = vector.load %arg11[%c0_22, %c0_23] : memref<8x1xf32, #tpu.memory_space<vmem>>, vector<8x1xf32>
    %30 = vector.broadcast %29 : vector<8x1xf32> to vector<8x80xf32>
    %31 = arith.addf %28, %30 : vector<8x80xf32>
    %cst_24 = arith.constant 0.000000e+00 : f32
    %32 = vector.broadcast %cst_24 : f32 to vector<8x80xf32>
    %33 = arith.maximumf %31, %32 : vector<8x80xf32>
    %34 = arith.truncf %33 : vector<8x80xf32> to vector<8x80xbf16>
    %c0_25 = arith.constant 0 : index
    %c0_26 = arith.constant 0 : index
    %35 = vector.load %arg7[%c0_25, %c0_26] : memref<1x8xbf16, #tpu.memory_space<vmem>>, vector<1x8xbf16>
    %cst_27 = arith.constant dense<0.000000e+00> : vector<1x80xf32>
    %36 = tpu.matmul %35, %34, %cst_27 {dimension_numbers = #tpu.dot_dimension_numbers<[1], [0], [0], [1], [0, 0, 1, 1], [], []>} : vector<1x8xbf16>, vector<8x80xbf16>, vector<1x80xf32> -> vector<1x80xf32>
    %c0_28 = arith.constant 0 : index
    %c0_29 = arith.constant 0 : index
    %37 = vector.load %arg12[%c0_28, %c0_29] : memref<1x1xf32, #tpu.memory_space<vmem>>, vector<1x1xf32>
    %38 = vector.broadcast %37 : vector<1x1xf32> to vector<1x80xf32>
    %39 = arith.addf %36, %38 : vector<1x80xf32>
    %c0_30 = arith.constant 0 : index
    %c0_31 = arith.constant 0 : index
    %c0_32 = arith.constant 0 : index
    %40 = vector.load %arg13[%c0_30, %c0_31, %c0_32] : memref<1x1x80xf32, #tpu.memory_space<vmem>>, vector<1x1x80xf32>
    %41 = vector.shape_cast %40 : vector<1x1x80xf32> to vector<1x80xf32>
    %42 = vector.shape_cast %39 : vector<1x80xf32> to vector<1x1x80xf32>
    tpu.vector_store %arg13[%c0_30, %c0_31, %c0_32], %42 {strides = array<i32>} : memref<1x1x80xf32, #tpu.memory_space<vmem>>, vector<1x1x80xf32>,
    return
  }
  func.func @transform_0(%arg0: i32, %arg1: i32) -> (i32, i32, i32) {
    %c0_i32 = arith.constant 0 : i32
    %c0_i32_0 = arith.constant 0 : i32
    return %arg0, %c0_i32, %arg1 : i32, i32, i32
  }
  func.func @transform_1(%arg0: i32, %arg1: i32) -> (i32, i32) {
    %c0_i32 = arith.constant 0 : i32
    %c0_i32_0 = arith.constant 0 : i32
    %c0_i32_1 = arith.constant 0 : i32
    return %c0_i32, %c0_i32_0 : i32, i32
  }
  func.func @transform_2(%arg0: i32, %arg1: i32) -> (i32, i32) {
    %c0_i32 = arith.constant 0 : i32
    %c0_i32_0 = arith.constant 0 : i32
    %c0_i32_1 = arith.constant 0 : i32
    return %c0_i32, %c0_i32_0 : i32, i32
  }
  func.func @transform_3(%arg0: i32, %arg1: i32) -> (i32, i32) {
    %c0_i32 = arith.constant 0 : i32
    %c0_i32_0 = arith.constant 0 : i32
    %c0_i32_1 = arith.constant 0 : i32
    return %c0_i32, %c0_i32_0 : i32, i32
  }
  func.func @transform_4(%arg0: i32, %arg1: i32) -> (i32, i32) {
    %c0_i32 = arith.constant 0 : i32
    %c0_i32_0 = arith.constant 0 : i32
    %c0_i32_1 = arith.constant 0 : i32
    return %c0_i32, %c0_i32_0 : i32, i32
  }
  func.func @transform_5(%arg0: i32, %arg1: i32) -> (i32, i32) {
    %c0_i32 = arith.constant 0 : i32
    %c0_i32_0 = arith.constant 0 : i32
    %c0_i32_1 = arith.constant 0 : i32
    return %c0_i32, %c0_i32_0 : i32, i32
  }
  func.func @transform_6(%arg0: i32, %arg1: i32) -> (i32, i32) {
    %c0_i32 = arith.constant 0 : i32
    %c0_i32_0 = arith.constant 0 : i32
    %c0_i32_1 = arith.constant 0 : i32
    return %c0_i32, %c0_i32_0 : i32, i32
  }
  func.func @transform_7(%arg0: i32, %arg1: i32) -> (i32, i32) {
    %c0_i32 = arith.constant 0 : i32
    %c0_i32_0 = arith.constant 0 : i32
    %c0_i32_1 = arith.constant 0 : i32
    return %c0_i32, %c0_i32_0 : i32, i32
  }
  func.func @transform_8(%arg0: i32, %arg1: i32) -> (i32, i32) {
    %c0_i32 = arith.constant 0 : i32
    %c0_i32_0 = arith.constant 0 : i32
    %c0_i32_1 = arith.constant 0 : i32
    return %c0_i32, %c0_i32_0 : i32, i32
  }
  func.func @transform_9(%arg0: i32, %arg1: i32) -> (i32, i32) {
    %c0_i32 = arith.constant 0 : i32
    %c0_i32_0 = arith.constant 0 : i32
    %c0_i32_1 = arith.constant 0 : i32
    return %c0_i32, %c0_i32_0 : i32, i32
  }
  func.func @transform_10(%arg0: i32, %arg1: i32) -> (i32, i32) {
    %c0_i32 = arith.constant 0 : i32
    %c0_i32_0 = arith.constant 0 : i32
    %c0_i32_1 = arith.constant 0 : i32
    return %c0_i32, %c0_i32_0 : i32, i32
  }
  func.func @transform_11(%arg0: i32, %arg1: i32) -> (i32, i32, i32) {
    %c0_i32 = arith.constant 0 : i32
    %c0_i32_0 = arith.constant 0 : i32
    return %arg0, %c0_i32, %arg1 : i32, i32, i32
  }
}

</mosaic_0001>

<llo_original>
// kernel: tpu_custom_call.1
$region0: #{tpu_custom_call.1}
  #allocation0 [shape = 'u32[]', space=smem, size = 0x4, offset = 0x4, fixed_abs, tag = 'smem constant byte address 0x4 - core index']
  #allocation1 [shape = 'u32[144,128]{1,0:T(1,128)}', space=vmem, size = 0x12000, scoped, tag = 'internal scratch']
  #allocation2 [shape = 'f32[1,1]{1,0:T(1,128)S(1)}', space=vmem, size = 0x200, scoped, tag = 'scoped memory for tpu_custom_call.1']
  %s0 = inlined_call_operand.vmem [shape: f32[2,512,80], index: 0, kind: input, shape index: {}]
  %s1 = inlined_call_operand.vmem [shape: bf16[256,512], index: 1, kind: input, shape index: {}]
  %s2 = inlined_call_operand.vmem [shape: bf16[128,256], index: 2, kind: input, shape index: {}]
  %s3 = inlined_call_operand.vmem [shape: bf16[32,128], index: 3, kind: input, shape index: {}]
  %s4 = inlined_call_operand.vmem [shape: bf16[8,32], index: 4, kind: input, shape index: {}]
  %s5 = inlined_call_operand.vmem [shape: bf16[1,8], index: 5, kind: input, shape index: {}]
  %s6 = inlined_call_operand.vmem [shape: f32[256,1], index: 6, kind: input, shape index: {}]
  %s7 = inlined_call_operand.vmem [shape: f32[128,1], index: 7, kind: input, shape index: {}]
  %s8 = inlined_call_operand.vmem [shape: f32[32,1], index: 8, kind: input, shape index: {}]
  %s9 = inlined_call_operand.vmem [shape: f32[8,1], index: 9, kind: input, shape index: {}]
  %s10 = inlined_call_operand.<no memory space> [shape: f32[1,1], index: 10, kind: input, shape index: {}]
  %s11 = inlined_call_operand.hbm [shape: f32[2,1,80], index: 11, kind: output, shape index: {}]
  %s12 = sld [smem:[#allocation0]]
  $region77: #{tpu_custom_call.1} parent=0
    _
  %s14 = ssub.s32 1, %s12
  %s15 = scalar_select 0, %s14, %s12
  %v16 = vstv %s10
  %17 = vst [vmem:[#allocation2] sm:$0x1] %v16
  $region1: #{tpu_custom_call.1} parent=0
    #allocation3 [shape = 'u8[1024]{0}', space=vmem, size = 0x400, scoped, tag = 'output window, operand 0']
    #allocation4 [shape = 's32[2]{0}', space=sflag, size = 0x8, scoped, tag = 'scoped memory for tpu_custom_call.1']
    %18 = vsyncpa [#allocation4], 0
    %s19 = scalar_lea.sflag [#allocation4], 1
    %20 = vsyncpa %s19, 0
    loop: start=0, step=1, limit=4
    $region2: #{tpu_custom_call.1} parent=1 // loop_pre_header
      _
    $region3: #{tpu_custom_call.1} parent=1 // loop_header
      %s22 = sphi 0, %s26
      %p23 = scmp.ge.s32.totalorder %s22, 4
      %s29 = sphi 0, %s41
      %s30 = sphi 0, %s37
      %s31 = sphi 0, %s29
      %s32 = sphi 0, %s30
      %s33 = sphi 0, %s31
      %s34 = sphi 0, %s32
      %s46 = sphi 0, %s48
      %s49 = sphi 0, %s46
      %s50 = sphi 0, %s49
      %s66 = sphi 0, %s50
      %s70 = sphi 0, %s70
      %s72 = sphi 0, %s70
      %s73 = sphi 0, %s72
      %s87 = sphi 0, %s73
      %s91 = sphi 0, %s91
      %s93 = sphi 0, %s91
      %s94 = sphi 0, %s93
      %s108 = sphi 0, %s94
      %s112 = sphi 0, %s112
      %s114 = sphi 0, %s112
      %s115 = sphi 0, %s114
      %s129 = sphi 0, %s115
      %s133 = sphi 0, %s133
      %s135 = sphi 0, %s133
      %s136 = sphi 0, %s135
      %s150 = sphi 0, %s136
      %s154 = sphi 0, %s154
      %s156 = sphi 0, %s154
      %s157 = sphi 0, %s156
      %s171 = sphi 0, %s157
      %s175 = sphi 0, %s175
      %s177 = sphi 0, %s175
      %s178 = sphi 0, %s177
      %s192 = sphi 0, %s178
      %s196 = sphi 0, %s196
      %s198 = sphi 0, %s196
      %s199 = sphi 0, %s198
      %s213 = sphi 0, %s199
      %s217 = sphi 0, %s217
      %s219 = sphi 0, %s217
      %s220 = sphi 0, %s219
      %s234 = sphi 0, %s220
      %s238 = sphi 0, %s238
      %s240 = sphi 0, %s238
      %s241 = sphi 0, %s240
      %s255 = sphi 0, %s241
      %s259 = sphi 0, %s259
      %s261 = sphi 0, %s259
      %s262 = sphi 0, %s261
      %s276 = sphi 0, %s262
      %s284 = sphi 0, %s286
      %s287 = sphi 0, %s284
      %s288 = sphi 0, %s287
      %s304 = sphi 0, %s288
    $region4: #{tpu_custom_call.1} parent=1 // loop_header_branch
      %25 = sbr.rel (%p23) target = $region8
    $region5: #{tpu_custom_call.1} parent=1 // loop_body
      %s27 = ssub.s32 %s22, 1
      %s28 = ssub.s32 %s22, 2
      %s35 = sadd.s32 1, %s30
      %p36 = scmp.ge.s32.totalorder %s35, 1
      %s37 = scalar_select %p36, 0, %s35
      %s38 = sadd.s32 1, %s29
      %s39 = scalar_select %p36, %s38, %s29
      %p40 = scmp.ge.s32.totalorder %s39, 2
      %s41 = scalar_select %p40, 0, %s39
      %s42 = ssub.s32 %s29, %s41
      %s43 = ssub.s32 %s30, %s37
      %s44 = sor.u32 %s42, %s43
      %p45 = scmp.eq.s32.totalorder %s44, 0
      %s47 = sadd.s32 %s46, 1
      %s48 = scalar_select %p45, %s46, %s47
      %p51 = pneg %p45
      %p52 = scmp.eq.s32.totalorder %s22, 1
      %p53 = por %p51, %p52
      %p54 = scmp.ne.s32.totalorder %s46, %s49
      %p55 = scmp.eq.s32.totalorder %s22, 0
      %p56 = por %p54, %p55
      %p57 = scmp.ne.s32.totalorder %s46, %s49
      %p58 = scmp.eq.s32.totalorder %s27, 1
      %p59 = por %p57, %p58
      %p60 = scmp.ne.s32.totalorder %s49, %s50
      %p61 = scmp.eq.s32.totalorder %s27, 0
      %p62 = por %p60, %p61
      %p63 = scmp.ne.s32.totalorder %s49, %s50
      %p64 = scmp.eq.s32.totalorder %s28, 1
      %p65 = por %p63, %p64
      %p67 = scmp.ne.s32.totalorder %s50, %s66
      %p68 = scmp.eq.s32.totalorder %s28, 0
      %p69 = por %p67, %p68
      %s71 = sadd.s32 %s70, 1
      %p74 = scmp.eq.s32.totalorder %s22, 1
      %p75 = scmp.ne.s32.totalorder %s70, %s72
      %p76 = scmp.eq.s32.totalorder %s22, 0
      %p77 = por %p75, %p76
      %p78 = scmp.ne.s32.totalorder %s70, %s72
      %p79 = scmp.eq.s32.totalorder %s27, 1
      %p80 = por %p78, %p79
      %p81 = scmp.ne.s32.totalorder %s72, %s73
      %p82 = scmp.eq.s32.totalorder %s27, 0
      %p83 = por %p81, %p82
      %p84 = scmp.ne.s32.totalorder %s72, %s73
      %p85 = scmp.eq.s32.totalorder %s28, 1
      %p86 = por %p84, %p85
      %p88 = scmp.ne.s32.totalorder %s73, %s87
      %p89 = scmp.eq.s32.totalorder %s28, 0
      %p90 = por %p88, %p89
      %s92 = sadd.s32 %s91, 1
      %p95 = scmp.eq.s32.totalorder %s22, 1
      %p96 = scmp.ne.s32.totalorder %s91, %s93
      %p97 = scmp.eq.s32.totalorder %s22, 0
      %p98 = por %p96, %p97
      %p99 = scmp.ne.s32.totalorder %s91, %s93
      %p100 = scmp.eq.s32.totalorder %s27, 1
      %p101 = por %p99, %p100
      %p102 = scmp.ne.s32.totalorder %s93, %s94
      %p103 = scmp.eq.s32.totalorder %s27, 0
      %p104 = por %p102, %p103
      %p105 = scmp.ne.s32.totalorder %s93, %s94
      %p106 = scmp.eq.s32.totalorder %s28, 1
      %p107 = por %p105, %p106
      %p109 = scmp.ne.s32.totalorder %s94, %s108
      %p110 = scmp.eq.s32.totalorder %s28, 0
      %p111 = por %p109, %p110
      %s113 = sadd.s32 %s112, 1
      %p116 = scmp.eq.s32.totalorder %s22, 1
      %p117 = scmp.ne.s32.totalorder %s112, %s114
      %p118 = scmp.eq.s32.totalorder %s22, 0
      %p119 = por %p117, %p118
      %p120 = scmp.ne.s32.totalorder %s112, %s114
      %p121 = scmp.eq.s32.totalorder %s27, 1
      %p122 = por %p120, %p121
      %p123 = scmp.ne.s32.totalorder %s114, %s115
      %p124 = scmp.eq.s32.totalorder %s27, 0
      %p125 = por %p123, %p124
      %p126 = scmp.ne.s32.totalorder %s114, %s115
      %p127 = scmp.eq.s32.totalorder %s28, 1
      %p128 = por %p126, %p127
      %p130 = scmp.ne.s32.totalorder %s115, %s129
      %p131 = scmp.eq.s32.totalorder %s28, 0
      %p132 = por %p130, %p131
      %s134 = sadd.s32 %s133, 1
      %p137 = scmp.eq.s32.totalorder %s22, 1
      %p138 = scmp.ne.s32.totalorder %s133, %s135
      %p139 = scmp.eq.s32.totalorder %s22, 0
      %p140 = por %p138, %p139
      %p141 = scmp.ne.s32.totalorder %s133, %s135
      %p142 = scmp.eq.s32.totalorder %s27, 1
      %p143 = por %p141, %p142
      %p144 = scmp.ne.s32.totalorder %s135, %s136
      %p145 = scmp.eq.s32.totalorder %s27, 0
      %p146 = por %p144, %p145
      %p147 = scmp.ne.s32.totalorder %s135, %s136
      %p148 = scmp.eq.s32.totalorder %s28, 1
      %p149 = por %p147, %p148
      %p151 = scmp.ne.s32.totalorder %s136, %s150
      %p152 = scmp.eq.s32.totalorder %s28, 0
      %p153 = por %p151, %p152
      %s155 = sadd.s32 %s154, 1
      %p158 = scmp.eq.s32.totalorder %s22, 1
      %p159 = scmp.ne.s32.totalorder %s154, %s156
      %p160 = scmp.eq.s32.totalorder %s22, 0
      %p161 = por %p159, %p160
      %p162 = scmp.ne.s32.totalorder %s154, %s156
      %p163 = scmp.eq.s32.totalorder %s27, 1
      %p164 = por %p162, %p163
      %p165 = scmp.ne.s32.totalorder %s156, %s157
      %p166 = scmp.eq.s32.totalorder %s27, 0
      %p167 = por %p165, %p166
      %p168 = scmp.ne.s32.totalorder %s156, %s157
      %p169 = scmp.eq.s32.totalorder %s28, 1
      %p170 = por %p168, %p169
      %p172 = scmp.ne.s32.totalorder %s157, %s171
      %p173 = scmp.eq.s32.totalorder %s28, 0
      %p174 = por %p172, %p173
      %s176 = sadd.s32 %s175, 1
      %p179 = scmp.eq.s32.totalorder %s22, 1
      %p180 = scmp.ne.s32.totalorder %s175, %s177
      %p181 = scmp.eq.s32.totalorder %s22, 0
      %p182 = por %p180, %p181
      %p183 = scmp.ne.s32.totalorder %s175, %s177
      %p184 = scmp.eq.s32.totalorder %s27, 1
      %p185 = por %p183, %p184
      %p186 = scmp.ne.s32.totalorder %s177, %s178
      %p187 = scmp.eq.s32.totalorder %s27, 0
      %p188 = por %p186, %p187
      %p189 = scmp.ne.s32.totalorder %s177, %s178
      %p190 = scmp.eq.s32.totalorder %s28, 1
      %p191 = por %p189, %p190
      %p193 = scmp.ne.s32.totalorder %s178, %s192
      %p194 = scmp.eq.s32.totalorder %s28, 0
      %p195 = por %p193, %p194
      %s197 = sadd.s32 %s196, 1
      %p200 = scmp.eq.s32.totalorder %s22, 1
      %p201 = scmp.ne.s32.totalorder %s196, %s198
      %p202 = scmp.eq.s32.totalorder %s22, 0
      %p203 = por %p201, %p202
      %p204 = scmp.ne.s32.totalorder %s196, %s198
      %p205 = scmp.eq.s32.totalorder %s27, 1
      %p206 = por %p204, %p205
      %p207 = scmp.ne.s32.totalorder %s198, %s199
      %p208 = scmp.eq.s32.totalorder %s27, 0
      %p209 = por %p207, %p208
      %p210 = scmp.ne.s32.totalorder %s198, %s199
      %p211 = scmp.eq.s32.totalorder %s28, 1
      %p212 = por %p210, %p211
      %p214 = scmp.ne.s32.totalorder %s199, %s213
      %p215 = scmp.eq.s32.totalorder %s28, 0
      %p216 = por %p214, %p215
      %s218 = sadd.s32 %s217, 1
      %p221 = scmp.eq.s32.totalorder %s22, 1
      %p222 = scmp.ne.s32.totalorder %s217, %s219
      %p223 = scmp.eq.s32.totalorder %s22, 0
      %p224 = por %p222, %p223
      %p225 = scmp.ne.s32.totalorder %s217, %s219
      %p226 = scmp.eq.s32.totalorder %s27, 1
      %p227 = por %p225, %p226
      %p228 = scmp.ne.s32.totalorder %s219, %s220
      %p229 = scmp.eq.s32.totalorder %s27, 0
      %p230 = por %p228, %p229
      %p231 = scmp.ne.s32.totalorder %s219, %s220
      %p232 = scmp.eq.s32.totalorder %s28, 1
      %p233 = por %p231, %p232
      %p235 = scmp.ne.s32.totalorder %s220, %s234
      %p236 = scmp.eq.s32.totalorder %s28, 0
      %p237 = por %p235, %p236
      %s239 = sadd.s32 %s238, 1
      %p242 = scmp.eq.s32.totalorder %s22, 1
      %p243 = scmp.ne.s32.totalorder %s238, %s240
      %p244 = scmp.eq.s32.totalorder %s22, 0
      %p245 = por %p243, %p244
      %p246 = scmp.ne.s32.totalorder %s238, %s240
      %p247 = scmp.eq.s32.totalorder %s27, 1
      %p248 = por %p246, %p247
      %p249 = scmp.ne.s32.totalorder %s240, %s241
      %p250 = scmp.eq.s32.totalorder %s27, 0
      %p251 = por %p249, %p250
      %p252 = scmp.ne.s32.totalorder %s240, %s241
      %p253 = scmp.eq.s32.totalorder %s28, 1
      %p254 = por %p252, %p253
      %p256 = scmp.ne.s32.totalorder %s241, %s255
      %p257 = scmp.eq.s32.totalorder %s28, 0
      %p258 = por %p256, %p257
      %s260 = sadd.s32 %s259, 1
      %p263 = scmp.eq.s32.totalorder %s22, 1
      %p264 = scmp.ne.s32.totalorder %s259, %s261
      %p265 = scmp.eq.s32.totalorder %s22, 0
      %p266 = por %p264, %p265
      %p267 = scmp.ne.s32.totalorder %s259, %s261
      %p268 = scmp.eq.s32.totalorder %s27, 1
      %p269 = por %p267, %p268
      %p270 = scmp.ne.s32.totalorder %s261, %s262
      %p271 = scmp.eq.s32.totalorder %s27, 0
      %p272 = por %p270, %p271
      %p273 = scmp.ne.s32.totalorder %s261, %s262
      %p274 = scmp.eq.s32.totalorder %s28, 1
      %p275 = por %p273, %p274
      %p277 = scmp.ne.s32.totalorder %s262, %s276
      %p278 = scmp.eq.s32.totalorder %s28, 0
      %p279 = por %p277, %p278
      %s280 = ssub.s32 %s29, %s41
      %s281 = ssub.s32 %s30, %s37
      %s282 = sor.u32 %s280, %s281
      %p283 = scmp.eq.s32.totalorder %s282, 0
      %s285 = sadd.s32 %s284, 1
      %s286 = scalar_select %p283, %s284, %s285
      %p289 = pneg %p283
      %p290 = scmp.eq.s32.totalorder %s22, 1
      %p291 = por %p289, %p290
      %p292 = scmp.ne.s32.totalorder %s284, %s287
      %p293 = scmp.eq.s32.totalorder %s22, 0
      %p294 = por %p292, %p293
      %p295 = scmp.ne.s32.totalorder %s284, %s287
      %p296 = scmp.eq.s32.totalorder %s27, 1
      %p297 = por %p295, %p296
      %p298 = scmp.ne.s32.totalorder %s287, %s288
      %p299 = scmp.eq.s32.totalorder %s27, 0
      %p300 = por %p298, %p299
      %p301 = scmp.ne.s32.totalorder %s287, %s288
      %p302 = scmp.eq.s32.totalorder %s28, 1
      %p303 = por %p301, %p302
      %p305 = scmp.ne.s32.totalorder %s288, %s304
      %p306 = scmp.eq.s32.totalorder %s28, 0
      %p307 = por %p305, %p306
      %p308 = scmp.le.s32.totalorder 1, %s22
      %p309 = scmp.lt.s32.totalorder %s22, 3
      %p310 = pnand %p308, %p309
      %p311 = pneg %p310
      // Predicated region
      $region9: #{tpu_custom_call.1} parent=5 // pred_check
        _
      $region10: #{tpu_custom_call.1} parent=5 // pred_check_branch
        %313 = sbr.rel (%p310) target = $region12
      $region11: #{tpu_custom_call.1} parent=5 // pred_region
        %s314 = ssub.s32 %s22, 1
        // Predicated region
        $region13: #{tpu_custom_call.1} parent=11 // pred_check
          %p315 = pneg %p83
        $region14: #{tpu_custom_call.1} parent=11 // pred_check_branch
          %317 = sbr.rel (%p315) target = $region16
        $region15: #{tpu_custom_call.1} parent=11 // pred_region
          _
        $region16: #{tpu_custom_call.1} parent=11 // pred_fallthru
          _
        // Predicated region
        $region17: #{tpu_custom_call.1} parent=11 // pred_check
          %p318 = pneg %p104
        $region18: #{tpu_custom_call.1} parent=11 // pred_check_branch
          %320 = sbr.rel (%p318) target = $region20
        $region19: #{tpu_custom_call.1} parent=11 // pred_region
          _
        $region20: #{tpu_custom_call.1} parent=11 // pred_fallthru
          _
        // Predicated region
        $region21: #{tpu_custom_call.1} parent=11 // pred_check
          %p321 = pneg %p125
        $region22: #{tpu_custom_call.1} parent=11 // pred_check_branch
          %323 = sbr.rel (%p321) target = $region24
        $region23: #{tpu_custom_call.1} parent=11 // pred_region
          _
        $region24: #{tpu_custom_call.1} parent=11 // pred_fallthru
          _
        // Predicated region
        $region25: #{tpu_custom_call.1} parent=11 // pred_check
          %p324 = pneg %p146
        $region26: #{tpu_custom_call.1} parent=11 // pred_check_branch
          %326 = sbr.rel (%p324) target = $region28
        $region27: #{tpu_custom_call.1} parent=11 // pred_region
          _
        $region28: #{tpu_custom_call.1} parent=11 // pred_fallthru
          _
        // Predicated region
        $region29: #{tpu_custom_call.1} parent=11 // pred_check
          %p327 = pneg %p167
        $region30: #{tpu_custom_call.1} parent=11 // pred_check_branch
          %329 = sbr.rel (%p327) target = $region32
        $region31: #{tpu_custom_call.1} parent=11 // pred_region
          _
        $region32: #{tpu_custom_call.1} parent=11 // pred_fallthru
          _
        // Predicated region
        $region33: #{tpu_custom_call.1} parent=11 // pred_check
          %p330 = pneg %p188
        $region34: #{tpu_custom_call.1} parent=11 // pred_check_branch
          %332 = sbr.rel (%p330) target = $region36
        $region35: #{tpu_custom_call.1} parent=11 // pred_region
          _
        $region36: #{tpu_custom_call.1} parent=11 // pred_fallthru
          _
        // Predicated region
        $region37: #{tpu_custom_call.1} parent=11 // pred_check
          %p333 = pneg %p209
        $region38: #{tpu_custom_call.1} parent=11 // pred_check_branch
          %335 = sbr.rel (%p333) target = $region40
        $region39: #{tpu_custom_call.1} parent=11 // pred_region
          _
        $region40: #{tpu_custom_call.1} parent=11 // pred_fallthru
          _
        // Predicated region
        $region41: #{tpu_custom_call.1} parent=11 // pred_check
          %p336 = pneg %p230
        $region42: #{tpu_custom_call.1} parent=11 // pred_check_branch
          %338 = sbr.rel (%p336) target = $region44
        $region43: #{tpu_custom_call.1} parent=11 // pred_region
          _
        $region44: #{tpu_custom_call.1} parent=11 // pred_fallthru
          _
        // Predicated region
        $region45: #{tpu_custom_call.1} parent=11 // pred_check
          %p339 = pneg %p251
        $region46: #{tpu_custom_call.1} parent=11 // pred_check_branch
          %341 = sbr.rel (%p339) target = $region48
        $region47: #{tpu_custom_call.1} parent=11 // pred_region
          _
        $region48: #{tpu_custom_call.1} parent=11 // pred_fallthru
          _
        // Predicated region
        $region49: #{tpu_custom_call.1} parent=11 // pred_check
          %p342 = pneg %p272
        $region50: #{tpu_custom_call.1} parent=11 // pred_check_branch
          %344 = sbr.rel (%p342) target = $region52
        $region51: #{tpu_custom_call.1} parent=11 // pred_region
          _
        $region52: #{tpu_custom_call.1} parent=11 // pred_fallthru
          _
      $region12: #{tpu_custom_call.1} parent=5 // pred_fallthru
        _
      %p345 = scmp.lt.s32.totalorder %s22, 2
      // Predicated region
      $region53: #{tpu_custom_call.1} parent=5 // pred_check
        %p346 = pneg %p345
      $region54: #{tpu_custom_call.1} parent=5 // pred_check_branch
        %348 = sbr.rel (%p346) target = $region56
      $region55: #{tpu_custom_call.1} parent=5 // pred_region
        // Predicated region
        $region57: #{tpu_custom_call.1} parent=55 // pred_check
          %p349 = pneg %p56
        $region58: #{tpu_custom_call.1} parent=55 // pred_check_branch
          %351 = sbr.rel (%p349) target = $region60
        $region59: #{tpu_custom_call.1} parent=55 // pred_region
          %p352 = scmp.lt.s32.totalorder %s29, 1
          %s353 = scalar_select %p352, %s29, 1
          %p354 = scmp.lt.s32.totalorder %s30, 0
          %s355 = scalar_select %p354, %s30, 0
          %s356 = smul.addr %s353, 64
          %s357 = sadd.s32 %s355, %s356
          %s358 = smul.addr %s357, 8
          %s359 = scalar_lea.vmem %s0, %s358
        $region60: #{tpu_custom_call.1} parent=55 // pred_fallthru
          _
      $region56: #{tpu_custom_call.1} parent=5 // pred_fallthru
        _
      %p360 = scmp.le.s32.totalorder 1, %s22
      %p361 = scmp.lt.s32.totalorder %s22, 3
      %p362 = pnand %p360, %p361
      %p363 = pneg %p362
      // Predicated region
      $region61: #{tpu_custom_call.1} parent=5 // pred_check
        _
      $region62: #{tpu_custom_call.1} parent=5 // pred_check_branch
        %365 = sbr.rel (%p362) target = $region64
      $region63: #{tpu_custom_call.1} parent=5 // pred_region
        %s366 = ssub.s32 %s22, 1
        %p367 = scmp.lt.s32.totalorder %s31, 1
        %s368 = scalar_select %p367, %s31, 1
        %p369 = scmp.lt.s32.totalorder %s32, 0
        %s370 = scalar_select %p369, %s32, 0
        %s371 = smul.addr %s368, 64
        %s372 = sadd.s32 %s370, %s371
        %s373 = smul.addr %s372, 8
        %s374 = scalar_lea.vmem %s0, %s373
        %p375 = pneg %p62
        %p376 = pneg %p59
        %p377 = pneg %p83
        %p378 = pneg %p80
        %p379 = pneg %p104
        %p380 = pneg %p101
        %p381 = pneg %p125
        %p382 = pneg %p122
        %p383 = pneg %p146
        %p384 = pneg %p143
        %p385 = pneg %p167
        %p386 = pneg %p164
        %p387 = pneg %p188
        %p388 = pneg %p185
        %p389 = pneg %p209
        %p390 = pneg %p206
        %p391 = pneg %p230
        %p392 = pneg %p227
        %p393 = pneg %p251
        %p394 = pneg %p248
        %p395 = pneg %p272
        %p396 = pneg %p269
        %p397 = pneg %p300
        %p398 = pneg %p297
        %s399 = sand.u32 %s287, 1
        %s400 = scalar_lea.sflag [#allocation4], %s399
        %s401 = sand.u32 %s287, 1
        %s402 = scalar_lea.vmem [#allocation3], %s401
        %p403 = scmp.lt.s32.totalorder %s31, 1
        %s404 = scalar_select %p403, %s31, 1
        %p405 = scmp.lt.s32.totalorder %s32, 0
        %s406 = scalar_select %p405, %s32, 0
        %s407 = smul.addr %s404, 64
        %s408 = sadd.s32 %s406, %s407
        %s409 = smul.addr %s408, 8
        %s410 = scalar_lea.vmem %s0, %s409
        %v412 = vld [vmem:[%s410] sm:$0xff]
        %v413 = vld [vmem:[%s410 + $0x8] sm:$0xff]
        %v414 = vld [vmem:[%s410 + $0x10] sm:$0xff]
        %v415 = vld [vmem:[%s410 + $0x18] sm:$0xff]
        %v416 = vld [vmem:[%s410 + $0x20] sm:$0xff]
        %v417 = vld [vmem:[%s410 + $0x28] sm:$0xff]
        %v418 = vld [vmem:[%s410 + $0x30] sm:$0xff]
        %v419 = vld [vmem:[%s410 + $0x38] sm:$0xff]
        %v420 = vld [vmem:[%s410 + $0x40] sm:$0xff]
        %v421 = vld [vmem:[%s410 + $0x48] sm:$0xff]
        %v422 = vld [vmem:[%s410 + $0x50] sm:$0xff]
        %v423 = vld [vmem:[%s410 + $0x58] sm:$0xff]
        %v424 = vld [vmem:[%s410 + $0x60] sm:$0xff]
        %v425 = vld [vmem:[%s410 + $0x68] sm:$0xff]
        %v426 = vld [vmem:[%s410 + $0x70] sm:$0xff]
        %v427 = vld [vmem:[%s410 + $0x78] sm:$0xff]
        %v428 = vld [vmem:[%s410 + $0x80] sm:$0xff]
        %v429 = vld [vmem:[%s410 + $0x88] sm:$0xff]
        %v430 = vld [vmem:[%s410 + $0x90] sm:$0xff]
        %v431 = vld [vmem:[%s410 + $0x98] sm:$0xff]
        %v432 = vld [vmem:[%s410 + $0xa0] sm:$0xff]
        %v433 = vld [vmem:[%s410 + $0xa8] sm:$0xff]
        %v434 = vld [vmem:[%s410 + $0xb0] sm:$0xff]
        %v435 = vld [vmem:[%s410 + $0xb8] sm:$0xff]
        %v436 = vld [vmem:[%s410 + $0xc0] sm:$0xff]
        %v437 = vld [vmem:[%s410 + $0xc8] sm:$0xff]
        %v438 = vld [vmem:[%s410 + $0xd0] sm:$0xff]
        %v439 = vld [vmem:[%s410 + $0xd8] sm:$0xff]
        %v440 = vld [vmem:[%s410 + $0xe0] sm:$0xff]
        %v441 = vld [vmem:[%s410 + $0xe8] sm:$0xff]
        %v442 = vld [vmem:[%s410 + $0xf0] sm:$0xff]
        %v443 = vld [vmem:[%s410 + $0xf8] sm:$0xff]
        %v444 = vld [vmem:[%s410 + $0x100] sm:$0xff]
        %v445 = vld [vmem:[%s410 + $0x108] sm:$0xff]
        %v446 = vld [vmem:[%s410 + $0x110] sm:$0xff]
        %v447 = vld [vmem:[%s410 + $0x118] sm:$0xff]
        %v448 = vld [vmem:[%s410 + $0x120] sm:$0xff]
        %v449 = vld [vmem:[%s410 + $0x128] sm:$0xff]
        %v450 = vld [vmem:[%s410 + $0x130] sm:$0xff]
        %v451 = vld [vmem:[%s410 + $0x138] sm:$0xff]
        %v452 = vld [vmem:[%s410 + $0x140] sm:$0xff]
        %v453 = vld [vmem:[%s410 + $0x148] sm:$0xff]
        %v454 = vld [vmem:[%s410 + $0x150] sm:$0xff]
        %v455 = vld [vmem:[%s410 + $0x158] sm:$0xff]
        %v456 = vld [vmem:[%s410 + $0x160] sm:$0xff]
        %v457 = vld [vmem:[%s410 + $0x168] sm:$0xff]
        %v458 = vld [vmem:[%s410 + $0x170] sm:$0xff]
        %v459 = vld [vmem:[%s410 + $0x178] sm:$0xff]
        %v460 = vld [vmem:[%s410 + $0x180] sm:$0xff]
        %v461 = vld [vmem:[%s410 + $0x188] sm:$0xff]
        %v462 = vld [vmem:[%s410 + $0x190] sm:$0xff]
        %v463 = vld [vmem:[%s410 + $0x198] sm:$0xff]
        %v464 = vld [vmem:[%s410 + $0x1a0] sm:$0xff]
        %v465 = vld [vmem:[%s410 + $0x1a8] sm:$0xff]
        %v466 = vld [vmem:[%s410 + $0x1b0] sm:$0xff]
        %v467 = vld [vmem:[%s410 + $0x1b8] sm:$0xff]
        %v468 = vld [vmem:[%s410 + $0x1c0] sm:$0xff]
        %v469 = vld [vmem:[%s410 + $0x1c8] sm:$0xff]
        %v470 = vld [vmem:[%s410 + $0x1d0] sm:$0xff]
        %v471 = vld [vmem:[%s410 + $0x1d8] sm:$0xff]
        %v472 = vld [vmem:[%s410 + $0x1e0] sm:$0xff]
        %v473 = vld [vmem:[%s410 + $0x1e8] sm:$0xff]
        %v474 = vld [vmem:[%s410 + $0x1f0] sm:$0xff]
        %v475 = vld [vmem:[%s410 + $0x1f8] sm:$0xff]
        %v476 = vpack.c.bf16 %v413, %v412
        %v477 = vpack.c.bf16 %v415, %v414
        %v478 = vpack.c.bf16 %v417, %v416
        %v479 = vpack.c.bf16 %v419, %v418
        %v480 = vpack.c.bf16 %v421, %v420
        %v481 = vpack.c.bf16 %v423, %v422
        %v482 = vpack.c.bf16 %v425, %v424
        %v483 = vpack.c.bf16 %v427, %v426
        %v484 = vpack.c.bf16 %v429, %v428
        %v485 = vpack.c.bf16 %v431, %v430
        %v486 = vpack.c.bf16 %v433, %v432
        %v487 = vpack.c.bf16 %v435, %v434
        %v488 = vpack.c.bf16 %v437, %v436
        %v489 = vpack.c.bf16 %v439, %v438
        %v490 = vpack.c.bf16 %v441, %v440
        %v491 = vpack.c.bf16 %v443, %v442
        %v492 = vpack.c.bf16 %v445, %v444
        %v493 = vpack.c.bf16 %v447, %v446
        %v494 = vpack.c.bf16 %v449, %v448
        %v495 = vpack.c.bf16 %v451, %v450
        %v496 = vpack.c.bf16 %v453, %v452
        %v497 = vpack.c.bf16 %v455, %v454
        %v498 = vpack.c.bf16 %v457, %v456
        %v499 = vpack.c.bf16 %v459, %v458
        %v500 = vpack.c.bf16 %v461, %v460
        %v501 = vpack.c.bf16 %v463, %v462
        %v502 = vpack.c.bf16 %v465, %v464
        %v503 = vpack.c.bf16 %v467, %v466
        %v504 = vpack.c.bf16 %v469, %v468
        %v505 = vpack.c.bf16 %v471, %v470
        %v506 = vpack.c.bf16 %v473, %v472
        %v507 = vpack.c.bf16 %v475, %v474
        %v508 = vld [vmem:[%s1] sm:$0xff]
        %v509 = vld [vmem:[%s1 + $0x8] sm:$0xff]
        %v510 = vld [vmem:[%s1 + $0x10] sm:$0xff]
        %v511 = vld [vmem:[%s1 + $0x18] sm:$0xff]
        %v512 = vld [vmem:[%s1 + $0x20] sm:$0xff]
        %v513 = vld [vmem:[%s1 + $0x28] sm:$0xff]
        %v514 = vld [vmem:[%s1 + $0x30] sm:$0xff]
        %v515 = vld [vmem:[%s1 + $0x38] sm:$0xff]
        %v516 = vld [vmem:[%s1 + $0x40] sm:$0xff]
        %v517 = vld [vmem:[%s1 + $0x48] sm:$0xff]
        %v518 = vld [vmem:[%s1 + $0x50] sm:$0xff]
        %v519 = vld [vmem:[%s1 + $0x58] sm:$0xff]
        %v520 = vld [vmem:[%s1 + $0x60] sm:$0xff]
        %v521 = vld [vmem:[%s1 + $0x68] sm:$0xff]
        %v522 = vld [vmem:[%s1 + $0x70] sm:$0xff]
        %v523 = vld [vmem:[%s1 + $0x78] sm:$0xff]
        %v524 = vld [vmem:[%s1 + $0x80] sm:$0xff]
        %v525 = vld [vmem:[%s1 + $0x88] sm:$0xff]
        %v526 = vld [vmem:[%s1 + $0x90] sm:$0xff]
        %v527 = vld [vmem:[%s1 + $0x98] sm:$0xff]
        %v528 = vld [vmem:[%s1 + $0xa0] sm:$0xff]
        %v529 = vld [vmem:[%s1 + $0xa8] sm:$0xff]
        %v530 = vld [vmem:[%s1 + $0xb0] sm:$0xff]
        %v531 = vld [vmem:[%s1 + $0xb8] sm:$0xff]
        %v532 = vld [vmem:[%s1 + $0xc0] sm:$0xff]
        %v533 = vld [vmem:[%s1 + $0xc8] sm:$0xff]
        %v534 = vld [vmem:[%s1 + $0xd0] sm:$0xff]
        %v535 = vld [vmem:[%s1 + $0xd8] sm:$0xff]
        %v536 = vld [vmem:[%s1 + $0xe0] sm:$0xff]
        %v537 = vld [vmem:[%s1 + $0xe8] sm:$0xff]
        %v538 = vld [vmem:[%s1 + $0xf0] sm:$0xff]
        %v539 = vld [vmem:[%s1 + $0xf8] sm:$0xff]
        %v540 = vld [vmem:[%s1 + $0x100] sm:$0xff]
        %v541 = vld [vmem:[%s1 + $0x108] sm:$0xff]
        %v542 = vld [vmem:[%s1 + $0x110] sm:$0xff]
        %v543 = vld [vmem:[%s1 + $0x118] sm:$0xff]
        %v544 = vld [vmem:[%s1 + $0x120] sm:$0xff]
        %v545 = vld [vmem:[%s1 + $0x128] sm:$0xff]
        %v546 = vld [vmem:[%s1 + $0x130] sm:$0xff]
        %v547 = vld [vmem:[%s1 + $0x138] sm:$0xff]
        %v548 = vld [vmem:[%s1 + $0x140] sm:$0xff]
        %v549 = vld [vmem:[%s1 + $0x148] sm:$0xff]
        %v550 = vld [vmem:[%s1 + $0x150] sm:$0xff]
        %v551 = vld [vmem:[%s1 + $0x158] sm:$0xff]
        %v552 = vld [vmem:[%s1 + $0x160] sm:$0xff]
        %v553 = vld [vmem:[%s1 + $0x168] sm:$0xff]
        %v554 = vld [vmem:[%s1 + $0x170] sm:$0xff]
        %v555 = vld [vmem:[%s1 + $0x178] sm:$0xff]
        %v556 = vld [vmem:[%s1 + $0x180] sm:$0xff]
        %v557 = vld [vmem:[%s1 + $0x188] sm:$0xff]
        %v558 = vld [vmem:[%s1 + $0x190] sm:$0xff]
        %v559 = vld [vmem:[%s1 + $0x198] sm:$0xff]
        %v560 = vld [vmem:[%s1 + $0x1a0] sm:$0xff]
        %v561 = vld [vmem:[%s1 + $0x1a8] sm:$0xff]
        %v562 = vld [vmem:[%s1 + $0x1b0] sm:$0xff]
        %v563 = vld [vmem:[%s1 + $0x1b8] sm:$0xff]
        %v564 = vld [vmem:[%s1 + $0x1c0] sm:$0xff]
        %v565 = vld [vmem:[%s1 + $0x1c8] sm:$0xff]
        %v566 = vld [vmem:[%s1 + $0x1d0] sm:$0xff]
        %v567 = vld [vmem:[%s1 + $0x1d8] sm:$0xff]
        %v568 = vld [vmem:[%s1 + $0x1e0] sm:$0xff]
        %v569 = vld [vmem:[%s1 + $0x1e8] sm:$0xff]
        %v570 = vld [vmem:[%s1 + $0x1f0] sm:$0xff]
        %v571 = vld [vmem:[%s1 + $0x1f8] sm:$0xff]
        %v572 = vld [vmem:[%s6] sm:$0xff]
        %v573 = vld [vmem:[%s6 + $0x8] sm:$0xff]
        %v574 = vld [vmem:[%s6 + $0x10] sm:$0xff]
        %v575 = vld [vmem:[%s6 + $0x18] sm:$0xff]
        %v576 = vld [vmem:[%s6 + $0x20] sm:$0xff]
        %v577 = vld [vmem:[%s6 + $0x28] sm:$0xff]
        %v578 = vld [vmem:[%s6 + $0x30] sm:$0xff]
        %v579 = vld [vmem:[%s6 + $0x38] sm:$0xff]
        %v580 = vld [vmem:[%s6 + $0x40] sm:$0xff]
        %v581 = vld [vmem:[%s6 + $0x48] sm:$0xff]
        %v582 = vld [vmem:[%s6 + $0x50] sm:$0xff]
        %v583 = vld [vmem:[%s6 + $0x58] sm:$0xff]
        %v584 = vld [vmem:[%s6 + $0x60] sm:$0xff]
        %v585 = vld [vmem:[%s6 + $0x68] sm:$0xff]
        %v586 = vld [vmem:[%s6 + $0x70] sm:$0xff]
        %v587 = vld [vmem:[%s6 + $0x78] sm:$0xff]
        %v588 = vld [vmem:[%s6 + $0x80] sm:$0xff]
        %v589 = vld [vmem:[%s6 + $0x88] sm:$0xff]
        %v590 = vld [vmem:[%s6 + $0x90] sm:$0xff]
        %v591 = vld [vmem:[%s6 + $0x98] sm:$0xff]
        %v592 = vld [vmem:[%s6 + $0xa0] sm:$0xff]
        %v593 = vld [vmem:[%s6 + $0xa8] sm:$0xff]
        %v594 = vld [vmem:[%s6 + $0xb0] sm:$0xff]
        %v595 = vld [vmem:[%s6 + $0xb8] sm:$0xff]
        %v596 = vld [vmem:[%s6 + $0xc0] sm:$0xff]
        %v597 = vld [vmem:[%s6 + $0xc8] sm:$0xff]
        %v598 = vld [vmem:[%s6 + $0xd0] sm:$0xff]
        %v599 = vld [vmem:[%s6 + $0xd8] sm:$0xff]
        %v600 = vld [vmem:[%s6 + $0xe0] sm:$0xff]
        %v601 = vld [vmem:[%s6 + $0xe8] sm:$0xff]
        %v602 = vld [vmem:[%s6 + $0xf0] sm:$0xff]
        %v603 = vld [vmem:[%s6 + $0xf8] sm:$0xff]
        %605 = vset.pattern.permute.xlu0 0
        %606 = vperm.xlu0 %605, %v572
        %v607 = vpop.permute.xlu0 %606
        %610 = vset.pattern.permute.xlu0 0
        %611 = vperm.xlu0 %610, %v573
        %v612 = vpop.permute.xlu0 %611
        %615 = vset.pattern.permute.xlu0 0
        %616 = vperm.xlu0 %615, %v574
        %v617 = vpop.permute.xlu0 %616
        %620 = vset.pattern.permute.xlu0 0
        %621 = vperm.xlu0 %620, %v575
        %v622 = vpop.permute.xlu0 %621
        %625 = vset.pattern.permute.xlu0 0
        %626 = vperm.xlu0 %625, %v576
        %v627 = vpop.permute.xlu0 %626
        %630 = vset.pattern.permute.xlu0 0
        %631 = vperm.xlu0 %630, %v577
        %v632 = vpop.permute.xlu0 %631
        %635 = vset.pattern.permute.xlu0 0
        %636 = vperm.xlu0 %635, %v578
        %v637 = vpop.permute.xlu0 %636
        %640 = vset.pattern.permute.xlu0 0
        %641 = vperm.xlu0 %640, %v579
        %v642 = vpop.permute.xlu0 %641
        %645 = vset.pattern.permute.xlu0 0
        %646 = vperm.xlu0 %645, %v580
        %v647 = vpop.permute.xlu0 %646
        %650 = vset.pattern.permute.xlu0 0
        %651 = vperm.xlu0 %650, %v581
        %v652 = vpop.permute.xlu0 %651
        %655 = vset.pattern.permute.xlu0 0
        %656 = vperm.xlu0 %655, %v582
        %v657 = vpop.permute.xlu0 %656
        %660 = vset.pattern.permute.xlu0 0
        %661 = vperm.xlu0 %660, %v583
        %v662 = vpop.permute.xlu0 %661
        %665 = vset.pattern.permute.xlu0 0
        %666 = vperm.xlu0 %665, %v584
        %v667 = vpop.permute.xlu0 %666
        %670 = vset.pattern.permute.xlu0 0
        %671 = vperm.xlu0 %670, %v585
        %v672 = vpop.permute.xlu0 %671
        %675 = vset.pattern.permute.xlu0 0
        %676 = vperm.xlu0 %675, %v586
        %v677 = vpop.permute.xlu0 %676
        %680 = vset.pattern.permute.xlu0 0
        %681 = vperm.xlu0 %680, %v587
        %v682 = vpop.permute.xlu0 %681
        %685 = vset.pattern.permute.xlu0 0
        %686 = vperm.xlu0 %685, %v588
        %v687 = vpop.permute.xlu0 %686
        %690 = vset.pattern.permute.xlu0 0
        %691 = vperm.xlu0 %690, %v589
        %v692 = vpop.permute.xlu0 %691
        %695 = vset.pattern.permute.xlu0 0
        %696 = vperm.xlu0 %695, %v590
        %v697 = vpop.permute.xlu0 %696
        %700 = vset.pattern.permute.xlu0 0
        %701 = vperm.xlu0 %700, %v591
        %v702 = vpop.permute.xlu0 %701
        %705 = vset.pattern.permute.xlu0 0
        %706 = vperm.xlu0 %705, %v592
        %v707 = vpop.permute.xlu0 %706
        %710 = vset.pattern.permute.xlu0 0
        %711 = vperm.xlu0 %710, %v593
        %v712 = vpop.permute.xlu0 %711
        %715 = vset.pattern.permute.xlu0 0
        %716 = vperm.xlu0 %715, %v594
        %v717 = vpop.permute.xlu0 %716
        %720 = vset.pattern.permute.xlu0 0
        %721 = vperm.xlu0 %720, %v595
        %v722 = vpop.permute.xlu0 %721
        %725 = vset.pattern.permute.xlu0 0
        %726 = vperm.xlu0 %725, %v596
        %v727 = vpop.permute.xlu0 %726
        %730 = vset.pattern.permute.xlu0 0
        %731 = vperm.xlu0 %730, %v597
        %v732 = vpop.permute.xlu0 %731
        %735 = vset.pattern.permute.xlu0 0
        %736 = vperm.xlu0 %735, %v598
        %v737 = vpop.permute.xlu0 %736
        %740 = vset.pattern.permute.xlu0 0
        %741 = vperm.xlu0 %740, %v599
        %v742 = vpop.permute.xlu0 %741
        %745 = vset.pattern.permute.xlu0 0
        %746 = vperm.xlu0 %745, %v600
        %v747 = vpop.permute.xlu0 %746
        %750 = vset.pattern.permute.xlu0 0
        %751 = vperm.xlu0 %750, %v601
        %v752 = vpop.permute.xlu0 %751
        %755 = vset.pattern.permute.xlu0 0
        %756 = vperm.xlu0 %755, %v602
        %v757 = vpop.permute.xlu0 %756
        %760 = vset.pattern.permute.xlu0 0
        %761 = vperm.xlu0 %760, %v603
        %v762 = vpop.permute.xlu0 %761
        %v828 = vunpack.c.l.b16 %v508
        %v829 = vunpack.c.h.b16 %v508
        %v830 = vunpack.c.l.b16 %v509
        %v831 = vunpack.c.h.b16 %v509
        %v832 = vunpack.c.l.b16 %v510
        %v833 = vunpack.c.h.b16 %v510
        %v834 = vunpack.c.l.b16 %v511
        %v835 = vunpack.c.h.b16 %v511
        %v836 = vunpack.c.l.b16 %v512
        %v837 = vunpack.c.h.b16 %v512
        %v838 = vunpack.c.l.b16 %v513
        %v839 = vunpack.c.h.b16 %v513
        %v840 = vunpack.c.l.b16 %v514
        %v841 = vunpack.c.h.b16 %v514
        %v842 = vunpack.c.l.b16 %v515
        %v843 = vunpack.c.h.b16 %v515
        %v844 = vunpack.c.l.b16 %v516
        %v845 = vunpack.c.h.b16 %v516
        %v846 = vunpack.c.l.b16 %v517
        %v847 = vunpack.c.h.b16 %v517
        %v848 = vunpack.c.l.b16 %v518
        %v849 = vunpack.c.h.b16 %v518
        %v850 = vunpack.c.l.b16 %v519
        %v851 = vunpack.c.h.b16 %v519
        %v852 = vunpack.c.l.b16 %v520
        %v853 = vunpack.c.h.b16 %v520
        %v854 = vunpack.c.l.b16 %v521
        %v855 = vunpack.c.h.b16 %v521
        %v856 = vunpack.c.l.b16 %v522
        %v857 = vunpack.c.h.b16 %v522
        %v858 = vunpack.c.l.b16 %v523
        %v859 = vunpack.c.h.b16 %v523
        %v860 = vunpack.c.l.b16 %v524
        %v861 = vunpack.c.h.b16 %v524
        %v862 = vunpack.c.l.b16 %v525
        %v863 = vunpack.c.h.b16 %v525
        %v864 = vunpack.c.l.b16 %v526
        %v865 = vunpack.c.h.b16 %v526
        %v866 = vunpack.c.l.b16 %v527
        %v867 = vunpack.c.h.b16 %v527
        %v868 = vunpack.c.l.b16 %v528
        %v869 = vunpack.c.h.b16 %v528
        %v870 = vunpack.c.l.b16 %v529
        %v871 = vunpack.c.h.b16 %v529
        %v872 = vunpack.c.l.b16 %v530
        %v873 = vunpack.c.h.b16 %v530
        %v874 = vunpack.c.l.b16 %v531
        %v875 = vunpack.c.h.b16 %v531
        %v876 = vunpack.c.l.b16 %v532
        %v877 = vunpack.c.h.b16 %v532
        %v878 = vunpack.c.l.b16 %v533
        %v879 = vunpack.c.h.b16 %v533
        %v880 = vunpack.c.l.b16 %v534
        %v881 = vunpack.c.h.b16 %v534
        %v882 = vunpack.c.l.b16 %v535
        %v883 = vunpack.c.h.b16 %v535
        %v884 = vunpack.c.l.b16 %v536
        %v885 = vunpack.c.h.b16 %v536
        %v886 = vunpack.c.l.b16 %v537
        %v887 = vunpack.c.h.b16 %v537
        %v888 = vunpack.c.l.b16 %v538
        %v889 = vunpack.c.h.b16 %v538
        %v890 = vunpack.c.l.b16 %v539
        %v891 = vunpack.c.h.b16 %v539
        %v892 = vunpack.c.l.b16 %v540
        %v893 = vunpack.c.h.b16 %v540
        %v894 = vunpack.c.l.b16 %v541
        %v895 = vunpack.c.h.b16 %v541
        %v896 = vunpack.c.l.b16 %v542
        %v897 = vunpack.c.h.b16 %v542
        %v898 = vunpack.c.l.b16 %v543
        %v899 = vunpack.c.h.b16 %v543
        %v900 = vunpack.c.l.b16 %v544
        %v901 = vunpack.c.h.b16 %v544
        %v902 = vunpack.c.l.b16 %v545
        %v903 = vunpack.c.h.b16 %v545
        %v904 = vunpack.c.l.b16 %v546
        %v905 = vunpack.c.h.b16 %v546
        %v906 = vunpack.c.l.b16 %v547
        %v907 = vunpack.c.h.b16 %v547
        %v908 = vunpack.c.l.b16 %v548
        %v909 = vunpack.c.h.b16 %v548
        %v910 = vunpack.c.l.b16 %v549
        %v911 = vunpack.c.h.b16 %v549
        %v912 = vunpack.c.l.b16 %v550
        %v913 = vunpack.c.h.b16 %v550
        %v914 = vunpack.c.l.b16 %v551
        %v915 = vunpack.c.h.b16 %v551
        %v916 = vunpack.c.l.b16 %v552
        %v917 = vunpack.c.h.b16 %v552
        %v918 = vunpack.c.l.b16 %v553
        %v919 = vunpack.c.h.b16 %v553
        %v920 = vunpack.c.l.b16 %v554
        %v921 = vunpack.c.h.b16 %v554
        %v922 = vunpack.c.l.b16 %v555
        %v923 = vunpack.c.h.b16 %v555
        %v924 = vunpack.c.l.b16 %v556
        %v925 = vunpack.c.h.b16 %v556
        %v926 = vunpack.c.l.b16 %v557
        %v927 = vunpack.c.h.b16 %v557
        %v928 = vunpack.c.l.b16 %v558
        %v929 = vunpack.c.h.b16 %v558
        %v930 = vunpack.c.l.b16 %v559
        %v931 = vunpack.c.h.b16 %v559
        %v932 = vunpack.c.l.b16 %v560
        %v933 = vunpack.c.h.b16 %v560
        %v934 = vunpack.c.l.b16 %v561
        %v935 = vunpack.c.h.b16 %v561
        %v936 = vunpack.c.l.b16 %v562
        %v937 = vunpack.c.h.b16 %v562
        %v938 = vunpack.c.l.b16 %v563
        %v939 = vunpack.c.h.b16 %v563
        %v940 = vunpack.c.l.b16 %v564
        %v941 = vunpack.c.h.b16 %v564
        %v942 = vunpack.c.l.b16 %v565
        %v943 = vunpack.c.h.b16 %v565
        %v944 = vunpack.c.l.b16 %v566
        %v945 = vunpack.c.h.b16 %v566
        %v946 = vunpack.c.l.b16 %v567
        %v947 = vunpack.c.h.b16 %v567
        %v948 = vunpack.c.l.b16 %v568
        %v949 = vunpack.c.h.b16 %v568
        %v950 = vunpack.c.l.b16 %v569
        %v951 = vunpack.c.h.b16 %v569
        %v952 = vunpack.c.l.b16 %v570
        %v953 = vunpack.c.h.b16 %v570
        %v954 = vunpack.c.l.b16 %v571
        %v955 = vunpack.c.h.b16 %v571
        %v956 = vpack.c.b16 %v832, %v828
        %v957 = vpack.c.b16 %v833, %v829
        %v958 = vpack.c.b16 %v834, %v830
        %v959 = vpack.c.b16 %v835, %v831
        %v960 = vpack.c.b16 %v840, %v836
        %v961 = vpack.c.b16 %v841, %v837
        %v962 = vpack.c.b16 %v842, %v838
        %v963 = vpack.c.b16 %v843, %v839
        %v964 = vpack.c.b16 %v848, %v844
        %v965 = vpack.c.b16 %v849, %v845
        %v966 = vpack.c.b16 %v850, %v846
        %v967 = vpack.c.b16 %v851, %v847
        %v968 = vpack.c.b16 %v856, %v852
        %v969 = vpack.c.b16 %v857, %v853
        %v970 = vpack.c.b16 %v858, %v854
        %v971 = vpack.c.b16 %v859, %v855
        %v972 = vpack.c.b16 %v864, %v860
        %v973 = vpack.c.b16 %v865, %v861
        %v974 = vpack.c.b16 %v866, %v862
        %v975 = vpack.c.b16 %v867, %v863
        %v976 = vpack.c.b16 %v872, %v868
        %v977 = vpack.c.b16 %v873, %v869
        %v978 = vpack.c.b16 %v874, %v870
        %v979 = vpack.c.b16 %v875, %v871
        %v980 = vpack.c.b16 %v880, %v876
        %v981 = vpack.c.b16 %v881, %v877
        %v982 = vpack.c.b16 %v882, %v878
        %v983 = vpack.c.b16 %v883, %v879
        %v984 = vpack.c.b16 %v888, %v884
        %v985 = vpack.c.b16 %v889, %v885
        %v986 = vpack.c.b16 %v890, %v886
        %v987 = vpack.c.b16 %v891, %v887
        %v988 = vpack.c.b16 %v896, %v892
        %v989 = vpack.c.b16 %v897, %v893
        %v990 = vpack.c.b16 %v898, %v894
        %v991 = vpack.c.b16 %v899, %v895
        %v992 = vpack.c.b16 %v904, %v900
        %v993 = vpack.c.b16 %v905, %v901
        %v994 = vpack.c.b16 %v906, %v902
        %v995 = vpack.c.b16 %v907, %v903
        %v996 = vpack.c.b16 %v912, %v908
        %v997 = vpack.c.b16 %v913, %v909
        %v998 = vpack.c.b16 %v914, %v910
        %v999 = vpack.c.b16 %v915, %v911
        %v1000 = vpack.c.b16 %v920, %v916
        %v1001 = vpack.c.b16 %v921, %v917
        %v1002 = vpack.c.b16 %v922, %v918
        %v1003 = vpack.c.b16 %v923, %v919
        %v1004 = vpack.c.b16 %v928, %v924
        %v1005 = vpack.c.b16 %v929, %v925
        %v1006 = vpack.c.b16 %v930, %v926
        %v1007 = vpack.c.b16 %v931, %v927
        %v1008 = vpack.c.b16 %v936, %v932
        %v1009 = vpack.c.b16 %v937, %v933
        %v1010 = vpack.c.b16 %v938, %v934
        %v1011 = vpack.c.b16 %v939, %v935
        %v1012 = vpack.c.b16 %v944, %v940
        %v1013 = vpack.c.b16 %v945, %v941
        %v1014 = vpack.c.b16 %v946, %v942
        %v1015 = vpack.c.b16 %v947, %v943
        %v1016 = vpack.c.b16 %v952, %v948
        %v1017 = vpack.c.b16 %v953, %v949
        %v1018 = vpack.c.b16 %v954, %v950
        %v1019 = vpack.c.b16 %v955, %v951
        %1084 = vmatprep.subr.bf16.mxu0 0
        %1085 = vmatpush1.bf16.msra.mxu0 %v476
        %1086 = vmatprep.subr.bf16.mxu0 0
        %1087 = vmatpush1.bf16.msra.mxu0 %v477
        %1088 = vmatprep.subr.bf16.mxu0 0
        %1089 = vmatpush1.bf16.msra.mxu0 %v478
        %1090 = vmatprep.subr.bf16.mxu0 0
        %1091 = vmatpush1.bf16.msra.mxu0 %v479
        %1092 = vmatprep.subr.bf16.mxu0 0
        %1093 = vmatpush1.bf16.msra.mxu0 %v480
        %1094 = vmatprep.subr.bf16.mxu0 0
        %1095 = vmatpush1.bf16.msra.mxu0 %v481
        %1096 = vmatprep.subr.bf16.mxu0 0
        %1097 = vmatpush1.bf16.msra.mxu0 %v482
        %1098 = vmatprep.subr.bf16.mxu0 0
        %1099 = vmatpush1.bf16.msra.mxu0 %v483
        %1100 = vmatprep.subr.bf16.mxu0 0
        %1101 = vmatpush1.bf16.msra.mxu0 %v484
        %1102 = vmatprep.subr.bf16.mxu0 0
        %1103 = vmatpush1.bf16.msra.mxu0 %v485
        %1104 = vmatprep.subr.bf16.mxu0 0
        %1105 = vmatpush1.bf16.msra.mxu0 %v486
        %1106 = vmatprep.subr.bf16.mxu0 0
        %1107 = vmatpush1.bf16.msra.mxu0 %v487
        %1108 = vmatprep.subr.bf16.mxu0 0
        %1109 = vmatpush1.bf16.msra.mxu0 %v488
        %1110 = vmatprep.subr.bf16.mxu0 0
        %1111 = vmatpush1.bf16.msra.mxu0 %v489
        %1112 = vmatprep.subr.bf16.mxu0 0
        %1113 = vmatpush1.bf16.msra.mxu0 %v490
        %1114 = vmatprep.subr.bf16.mxu0 0
        %1115 = vmatpush1.bf16.msra.mxu0 %v491
        %1116 = vmatprep.mubr.bf16.mxu0 %v957
        %1117 = vmatmul.mubr.bf16.gmra.mrb[0].mxu0 %v956
        %v1118 = vpop.f32.mrb[0].mxu0
        %v1119 = vadd.f32 %v607, %v1118
        %v1120 = vpop.f32.mrb[0].mxu0
        %v1121 = vpop.f32.mrb[0].mxu0
        %v1122 = vadd.f32 %v612, %v1121
        %v1123 = vpop.f32.mrb[0].mxu0
        %1124 = vmatprep.mubr.bf16.mxu0 %v961
        %1125 = vmatmul.mubr.bf16.gmra.mrb[0].mxu0 %v960
        %v1126 = vpop.f32.mrb[0].mxu0
        %v1127 = vadd.f32 %v617, %v1126
        %v1128 = vpop.f32.mrb[0].mxu0
        %v1129 = vpop.f32.mrb[0].mxu0
        %v1130 = vadd.f32 %v622, %v1129
        %v1131 = vpop.f32.mrb[0].mxu0
        %1132 = vmatprep.mubr.bf16.mxu0 %v965
        %1133 = vmatmul.mubr.bf16.gmra.mrb[0].mxu0 %v964
        %v1134 = vpop.f32.mrb[0].mxu0
        %v1135 = vadd.f32 %v627, %v1134
        %v1136 = vpop.f32.mrb[0].mxu0
        %v1137 = vpop.f32.mrb[0].mxu0
        %v1138 = vadd.f32 %v632, %v1137
        %v1139 = vpop.f32.mrb[0].mxu0
        %1140 = vmatprep.mubr.bf16.mxu0 %v969
        %1141 = vmatmul.mubr.bf16.gmra.mrb[0].mxu0 %v968
        %v1142 = vpop.f32.mrb[0].mxu0
        %v1143 = vadd.f32 %v637, %v1142
        %v1144 = vpop.f32.mrb[0].mxu0
        %v1145 = vpop.f32.mrb[0].mxu0
        %v1146 = vadd.f32 %v642, %v1145
        %v1147 = vpop.f32.mrb[0].mxu0
        %1148 = vmatprep.mubr.bf16.mxu0 %v973
        %1149 = vmatmul.mubr.bf16.gmra.mrb[0].mxu0 %v972
        %v1150 = vpop.f32.mrb[0].mxu0
        %v1151 = vadd.f32 %v647, %v1150
        %v1152 = vpop.f32.mrb[0].mxu0
        %v1153 = vpop.f32.mrb[0].mxu0
        %v1154 = vadd.f32 %v652, %v1153
        %v1155 = vpop.f32.mrb[0].mxu0
        %1156 = vmatprep.mubr.bf16.mxu0 %v977
        %1157 = vmatmul.mubr.bf16.gmra.mrb[0].mxu0 %v976
        %v1158 = vpop.f32.mrb[0].mxu0
        %v1159 = vadd.f32 %v657, %v1158
        %v1160 = vpop.f32.mrb[0].mxu0
        %v1161 = vpop.f32.mrb[0].mxu0
        %v1162 = vadd.f32 %v662, %v1161
        %v1163 = vpop.f32.mrb[0].mxu0
        %1164 = vmatprep.mubr.bf16.mxu0 %v981
        %1165 = vmatmul.mubr.bf16.gmra.mrb[0].mxu0 %v980
        %v1166 = vpop.f32.mrb[0].mxu0
        %v1167 = vadd.f32 %v667, %v1166
        %v1168 = vpop.f32.mrb[0].mxu0
        %v1169 = vpop.f32.mrb[0].mxu0
        %v1170 = vadd.f32 %v672, %v1169
        %v1171 = vpop.f32.mrb[0].mxu0
        %1172 = vmatprep.mubr.bf16.mxu0 %v985
        %1173 = vmatmul.mubr.bf16.gmra.mrb[0].mxu0 %v984
        %v1174 = vpop.f32.mrb[0].mxu0
        %v1175 = vadd.f32 %v677, %v1174
        %v1176 = vpop.f32.mrb[0].mxu0
        %v1177 = vpop.f32.mrb[0].mxu0
        %v1178 = vadd.f32 %v682, %v1177
        %v1179 = vpop.f32.mrb[0].mxu0
        %1180 = vmatprep.mubr.bf16.mxu0 %v989
        %1181 = vmatmul.mubr.bf16.gmra.mrb[0].mxu0 %v988
        %v1182 = vpop.f32.mrb[0].mxu0
        %v1183 = vadd.f32 %v687, %v1182
        %v1184 = vpop.f32.mrb[0].mxu0
        %v1185 = vpop.f32.mrb[0].mxu0
        %v1186 = vadd.f32 %v692, %v1185
        %v1187 = vpop.f32.mrb[0].mxu0
        %1188 = vmatprep.mubr.bf16.mxu0 %v993
        %1189 = vmatmul.mubr.bf16.gmra.mrb[0].mxu0 %v992
        %v1190 = vpop.f32.mrb[0].mxu0
        %v1191 = vadd.f32 %v697, %v1190
        %v1192 = vpop.f32.mrb[0].mxu0
        %v1193 = vpop.f32.mrb[0].mxu0
        %v1194 = vadd.f32 %v702, %v1193
        %v1195 = vpop.f32.mrb[0].mxu0
        %1196 = vmatprep.mubr.bf16.mxu0 %v997
        %1197 = vmatmul.mubr.bf16.gmra.mrb[0].mxu0 %v996
        %v1198 = vpop.f32.mrb[0].mxu0
        %v1199 = vadd.f32 %v707, %v1198
        %v1200 = vpop.f32.mrb[0].mxu0
        %v1201 = vpop.f32.mrb[0].mxu0
        %v1202 = vadd.f32 %v712, %v1201
        %v1203 = vpop.f32.mrb[0].mxu0
        %1204 = vmatprep.mubr.bf16.mxu0 %v1001
        %1205 = vmatmul.mubr.bf16.gmra.mrb[0].mxu0 %v1000
        %v1206 = vpop.f32.mrb[0].mxu0
        %v1207 = vadd.f32 %v717, %v1206
        %v1208 = vpop.f32.mrb[0].mxu0
        %v1209 = vpop.f32.mrb[0].mxu0
        %v1210 = vadd.f32 %v722, %v1209
        %v1211 = vpop.f32.mrb[0].mxu0
        %1212 = vmatprep.mubr.bf16.mxu0 %v1005
        %1213 = vmatmul.mubr.bf16.gmra.mrb[0].mxu0 %v1004
        %v1214 = vpop.f32.mrb[0].mxu0
        %v1215 = vadd.f32 %v727, %v1214
        %v1216 = vpop.f32.mrb[0].mxu0
        %v1217 = vpop.f32.mrb[0].mxu0
        %v1218 = vadd.f32 %v732, %v1217
        %v1219 = vpop.f32.mrb[0].mxu0
        %1220 = vmatprep.mubr.bf16.mxu0 %v1009
        %1221 = vmatmul.mubr.bf16.gmra.mrb[0].mxu0 %v1008
        %v1222 = vpop.f32.mrb[0].mxu0
        %v1223 = vadd.f32 %v737, %v1222
        %v1224 = vpop.f32.mrb[0].mxu0
        %v1225 = vpop.f32.mrb[0].mxu0
        %v1226 = vadd.f32 %v742, %v1225
        %v1227 = vpop.f32.mrb[0].mxu0
        %1228 = vmatprep.mubr.bf16.mxu0 %v1013
        %1229 = vmatmul.mubr.bf16.gmra.mrb[0].mxu0 %v1012
        %v1230 = vpop.f32.mrb[0].mxu0
        %v1231 = vadd.f32 %v747, %v1230
        %v1232 = vpop.f32.mrb[0].mxu0
        %v1233 = vpop.f32.mrb[0].mxu0
        %v1234 = vadd.f32 %v752, %v1233
        %v1235 = vpop.f32.mrb[0].mxu0
        %1236 = vmatprep.mubr.bf16.mxu0 %v1017
        %1237 = vmatmul.mubr.bf16.gmra.mrb[0].mxu0 %v1016
        %v1238 = vpop.f32.mrb[0].mxu0
        %v1239 = vadd.f32 %v757, %v1238
        %v1240 = vpop.f32.mrb[0].mxu0
        %v1241 = vpop.f32.mrb[0].mxu0
        %v1242 = vadd.f32 %v762, %v1241
        %v1243 = vpop.f32.mrb[0].mxu0
        %1244 = vdwg.mxu0
        %1245 = vmatprep.subr.bf16.mxu0 0
        %1246 = vmatpush1.bf16.msra.mxu0 %v492
        %1247 = vmatprep.subr.bf16.mxu0 0
        %1248 = vmatpush1.bf16.msra.mxu0 %v493
        %1249 = vmatprep.subr.bf16.mxu0 0
        %1250 = vmatpush1.bf16.msra.mxu0 %v494
        %1251 = vmatprep.subr.bf16.mxu0 0
        %1252 = vmatpush1.bf16.msra.mxu0 %v495
        %1253 = vmatprep.subr.bf16.mxu0 0
        %1254 = vmatpush1.bf16.msra.mxu0 %v496
        %1255 = vmatprep.subr.bf16.mxu0 0
        %1256 = vmatpush1.bf16.msra.mxu0 %v497
        %1257 = vmatprep.subr.bf16.mxu0 0
        %1258 = vmatpush1.bf16.msra.mxu0 %v498
        %1259 = vmatprep.subr.bf16.mxu0 0
        %1260 = vmatpush1.bf16.msra.mxu0 %v499
        %1261 = vmatprep.subr.bf16.mxu0 0
        %1262 = vmatpush1.bf16.msra.mxu0 %v500
        %1263 = vmatprep.subr.bf16.mxu0 0
        %1264 = vmatpush1.bf16.msra.mxu0 %v501
        %1265 = vmatprep.subr.bf16.mxu0 0
        %1266 = vmatpush1.bf16.msra.mxu0 %v502
        %1267 = vmatprep.subr.bf16.mxu0 0
        %1268 = vmatpush1.bf16.msra.mxu0 %v503
        %1269 = vmatprep.subr.bf16.mxu0 0
        %1270 = vmatpush1.bf16.msra.mxu0 %v504
        %1271 = vmatprep.subr.bf16.mxu0 0
        %1272 = vmatpush1.bf16.msra.mxu0 %v505
        %1273 = vmatprep.subr.bf16.mxu0 0
        %1274 = vmatpush1.bf16.msra.mxu0 %v506
        %1275 = vmatprep.subr.bf16.mxu0 0
        %1276 = vmatpush1.bf16.msra.mxu0 %v507
        %1277 = vmatprep.mubr.bf16.mxu0 %v959
        %1278 = vmatmul.mubr.bf16.gmra.mrb[0].mxu0 %v958
        %v1279 = vpop.f32.mrb[0].mxu0
        %v1280 = vadd.f32 %v1119, %v1279
        %v1281 = vpop.f32.mrb[0].mxu0
        %v1282 = vpop.f32.mrb[0].mxu0
        %v1283 = vadd.f32 %v1122, %v1282
        %v1284 = vpop.f32.mrb[0].mxu0
        %1285 = vmatprep.mubr.bf16.mxu0 %v963
        %1286 = vmatmul.mubr.bf16.gmra.mrb[0].mxu0 %v962
        %v1287 = vpop.f32.mrb[0].mxu0
        %v1288 = vadd.f32 %v1127, %v1287
        %v1289 = vpop.f32.mrb[0].mxu0
        %v1290 = vpop.f32.mrb[0].mxu0
        %v1291 = vadd.f32 %v1130, %v1290
        %v1292 = vpop.f32.mrb[0].mxu0
        %1293 = vmatprep.mubr.bf16.mxu0 %v967
        %1294 = vmatmul.mubr.bf16.gmra.mrb[0].mxu0 %v966
        %v1295 = vpop.f32.mrb[0].mxu0
        %v1296 = vadd.f32 %v1135, %v1295
        %v1297 = vpop.f32.mrb[0].mxu0
        %v1298 = vpop.f32.mrb[0].mxu0
        %v1299 = vadd.f32 %v1138, %v1298
        %v1300 = vpop.f32.mrb[0].mxu0
        %1301 = vmatprep.mubr.bf16.mxu0 %v971
        %1302 = vmatmul.mubr.bf16.gmra.mrb[0].mxu0 %v970
        %v1303 = vpop.f32.mrb[0].mxu0
        %v1304 = vadd.f32 %v1143, %v1303
        %v1305 = vpop.f32.mrb[0].mxu0
        %v1306 = vpop.f32.mrb[0].mxu0
        %v1307 = vadd.f32 %v1146, %v1306
        %v1308 = vpop.f32.mrb[0].mxu0
        %1309 = vmatprep.mubr.bf16.mxu0 %v975
        %1310 = vmatmul.mubr.bf16.gmra.mrb[0].mxu0 %v974
        %v1311 = vpop.f32.mrb[0].mxu0
        %v1312 = vadd.f32 %v1151, %v1311
        %v1313 = vpop.f32.mrb[0].mxu0
        %v1314 = vpop.f32.mrb[0].mxu0
        %v1315 = vadd.f32 %v1154, %v1314
        %v1316 = vpop.f32.mrb[0].mxu0
        %1317 = vmatprep.mubr.bf16.mxu0 %v979
        %1318 = vmatmul.mubr.bf16.gmra.mrb[0].mxu0 %v978
        %v1319 = vpop.f32.mrb[0].mxu0
        %v1320 = vadd.f32 %v1159, %v1319
        %v1321 = vpop.f32.mrb[0].mxu0
        %v1322 = vpop.f32.mrb[0].mxu0
        %v1323 = vadd.f32 %v1162, %v1322
        %v1324 = vpop.f32.mrb[0].mxu0
        %1325 = vmatprep.mubr.bf16.mxu0 %v983
        %1326 = vmatmul.mubr.bf16.gmra.mrb[0].mxu0 %v982
        %v1327 = vpop.f32.mrb[0].mxu0
        %v1328 = vadd.f32 %v1167, %v1327
        %v1329 = vpop.f32.mrb[0].mxu0
        %v1330 = vpop.f32.mrb[0].mxu0
        %v1331 = vadd.f32 %v1170, %v1330
        %v1332 = vpop.f32.mrb[0].mxu0
        %1333 = vmatprep.mubr.bf16.mxu0 %v987
        %1334 = vmatmul.mubr.bf16.gmra.mrb[0].mxu0 %v986
        %v1335 = vpop.f32.mrb[0].mxu0
        %v1336 = vadd.f32 %v1175, %v1335
        %v1337 = vpop.f32.mrb[0].mxu0
        %v1338 = vpop.f32.mrb[0].mxu0
        %v1339 = vadd.f32 %v1178, %v1338
        %v1340 = vpop.f32.mrb[0].mxu0
        %1341 = vmatprep.mubr.bf16.mxu0 %v991
        %1342 = vmatmul.mubr.bf16.gmra.mrb[0].mxu0 %v990
        %v1343 = vpop.f32.mrb[0].mxu0
        %v1344 = vadd.f32 %v1183, %v1343
        %v1345 = vpop.f32.mrb[0].mxu0
        %v1346 = vpop.f32.mrb[0].mxu0
        %v1347 = vadd.f32 %v1186, %v1346
        %v1348 = vpop.f32.mrb[0].mxu0
        %1349 = vmatprep.mubr.bf16.mxu0 %v995
        %1350 = vmatmul.mubr.bf16.gmra.mrb[0].mxu0 %v994
        %v1351 = vpop.f32.mrb[0].mxu0
        %v1352 = vadd.f32 %v1191, %v1351
        %v1353 = vpop.f32.mrb[0].mxu0
        %v1354 = vpop.f32.mrb[0].mxu0
        %v1355 = vadd.f32 %v1194, %v1354
        %v1356 = vpop.f32.mrb[0].mxu0
        %1357 = vmatprep.mubr.bf16.mxu0 %v999
        %1358 = vmatmul.mubr.bf16.gmra.mrb[0].mxu0 %v998
        %v1359 = vpop.f32.mrb[0].mxu0
        %v1360 = vadd.f32 %v1199, %v1359
        %v1361 = vpop.f32.mrb[0].mxu0
        %v1362 = vpop.f32.mrb[0].mxu0
        %v1363 = vadd.f32 %v1202, %v1362
        %v1364 = vpop.f32.mrb[0].mxu0
        %1365 = vmatprep.mubr.bf16.mxu0 %v1003
        %1366 = vmatmul.mubr.bf16.gmra.mrb[0].mxu0 %v1002
        %v1367 = vpop.f32.mrb[0].mxu0
        %v1368 = vadd.f32 %v1207, %v1367
        %v1369 = vpop.f32.mrb[0].mxu0
        %v1370 = vpop.f32.mrb[0].mxu0
        %v1371 = vadd.f32 %v1210, %v1370
        %v1372 = vpop.f32.mrb[0].mxu0
        %1373 = vmatprep.mubr.bf16.mxu0 %v1007
        %1374 = vmatmul.mubr.bf16.gmra.mrb[0].mxu0 %v1006
        %v1375 = vpop.f32.mrb[0].mxu0
        %v1376 = vadd.f32 %v1215, %v1375
        %v1377 = vpop.f32.mrb[0].mxu0
        %v1378 = vpop.f32.mrb[0].mxu0
        %v1379 = vadd.f32 %v1218, %v1378
        %v1380 = vpop.f32.mrb[0].mxu0
        %1381 = vmatprep.mubr.bf16.mxu0 %v1011
        %1382 = vmatmul.mubr.bf16.gmra.mrb[0].mxu0 %v1010
        %v1383 = vpop.f32.mrb[0].mxu0
        %v1384 = vadd.f32 %v1223, %v1383
        %v1385 = vpop.f32.mrb[0].mxu0
        %v1386 = vpop.f32.mrb[0].mxu0
        %v1387 = vadd.f32 %v1226, %v1386
        %v1388 = vpop.f32.mrb[0].mxu0
        %1389 = vmatprep.mubr.bf16.mxu0 %v1015
        %1390 = vmatmul.mubr.bf16.gmra.mrb[0].mxu0 %v1014
        %v1391 = vpop.f32.mrb[0].mxu0
        %v1392 = vadd.f32 %v1231, %v1391
        %v1393 = vpop.f32.mrb[0].mxu0
        %v1394 = vpop.f32.mrb[0].mxu0
        %v1395 = vadd.f32 %v1234, %v1394
        %v1396 = vpop.f32.mrb[0].mxu0
        %1397 = vmatprep.mubr.bf16.mxu0 %v1019
        %1398 = vmatmul.mubr.bf16.gmra.mrb[0].mxu0 %v1018
        %v1399 = vpop.f32.mrb[0].mxu0
        %v1400 = vadd.f32 %v1239, %v1399
        %v1401 = vpop.f32.mrb[0].mxu0
        %v1402 = vpop.f32.mrb[0].mxu0
        %v1403 = vadd.f32 %v1242, %v1402
        %v1404 = vpop.f32.mrb[0].mxu0
        %1405 = vdwg.mxu0
        %v1406 = vmax.f32 %v1280, 0.0
        %v1407 = vmax.f32 %v1283, 0.0
        %v1408 = vmax.f32 %v1288, 0.0
        %v1409 = vmax.f32 %v1291, 0.0
        %v1410 = vmax.f32 %v1296, 0.0
        %v1411 = vmax.f32 %v1299, 0.0
        %v1412 = vmax.f32 %v1304, 0.0
        %v1413 = vmax.f32 %v1307, 0.0
        %v1414 = vmax.f32 %v1312, 0.0
        %v1415 = vmax.f32 %v1315, 0.0
        %v1416 = vmax.f32 %v1320, 0.0
        %v1417 = vmax.f32 %v1323, 0.0
        %v1418 = vmax.f32 %v1328, 0.0
        %v1419 = vmax.f32 %v1331, 0.0
        %v1420 = vmax.f32 %v1336, 0.0
        %v1421 = vmax.f32 %v1339, 0.0
        %v1422 = vmax.f32 %v1344, 0.0
        %v1423 = vmax.f32 %v1347, 0.0
        %v1424 = vmax.f32 %v1352, 0.0
        %v1425 = vmax.f32 %v1355, 0.0
        %v1426 = vmax.f32 %v1360, 0.0
        %v1427 = vmax.f32 %v1363, 0.0
        %v1428 = vmax.f32 %v1368, 0.0
        %v1429 = vmax.f32 %v1371, 0.0
        %v1430 = vmax.f32 %v1376, 0.0
        %v1431 = vmax.f32 %v1379, 0.0
        %v1432 = vmax.f32 %v1384, 0.0
        %v1433 = vmax.f32 %v1387, 0.0
        %v1434 = vmax.f32 %v1392, 0.0
        %v1435 = vmax.f32 %v1395, 0.0
        %v1436 = vmax.f32 %v1400, 0.0
        %v1437 = vmax.f32 %v1403, 0.0
        %v1438 = vpack.c.bf16 %v1407, %v1406
        %v1439 = vpack.c.bf16 %v1409, %v1408
        %v1440 = vpack.c.bf16 %v1411, %v1410
        %v1441 = vpack.c.bf16 %v1413, %v1412
        %v1442 = vpack.c.bf16 %v1415, %v1414
        %v1443 = vpack.c.bf16 %v1417, %v1416
        %v1444 = vpack.c.bf16 %v1419, %v1418
        %v1445 = vpack.c.bf16 %v1421, %v1420
        %v1446 = vpack.c.bf16 %v1423, %v1422
        %v1447 = vpack.c.bf16 %v1425, %v1424
        %v1448 = vpack.c.bf16 %v1427, %v1426
        %v1449 = vpack.c.bf16 %v1429, %v1428
        %v1450 = vpack.c.bf16 %v1431, %v1430
        %v1451 = vpack.c.bf16 %v1433, %v1432
        %v1452 = vpack.c.bf16 %v1435, %v1434
        %v1453 = vpack.c.bf16 %v1437, %v1436
        %v1454 = vld [vmem:[%s2] sm:$0xff]
        %v1455 = vld [vmem:[%s2 + $0x8] sm:$0xff]
        %v1456 = vld [vmem:[%s2 + $0x10] sm:$0xff]
        %v1457 = vld [vmem:[%s2 + $0x18] sm:$0xff]
        %v1458 = vld [vmem:[%s2 + $0x20] sm:$0xff]
        %v1459 = vld [vmem:[%s2 + $0x28] sm:$0xff]
        %v1460 = vld [vmem:[%s2 + $0x30] sm:$0xff]
        %v1461 = vld [vmem:[%s2 + $0x38] sm:$0xff]
        %v1462 = vld [vmem:[%s2 + $0x40] sm:$0xff]
        %v1463 = vld [vmem:[%s2 + $0x48] sm:$0xff]
        %v1464 = vld [vmem:[%s2 + $0x50] sm:$0xff]
        %v1465 = vld [vmem:[%s2 + $0x58] sm:$0xff]
        %v1466 = vld [vmem:[%s2 + $0x60] sm:$0xff]
        %v1467 = vld [vmem:[%s2 + $0x68] sm:$0xff]
        %v1468 = vld [vmem:[%s2 + $0x70] sm:$0xff]
        %v1469 = vld [vmem:[%s2 + $0x78] sm:$0xff]
        %v1470 = vld [vmem:[%s7] sm:$0xff]
        %v1471 = vld [vmem:[%s7 + $0x8] sm:$0xff]
        %v1472 = vld [vmem:[%s7 + $0x10] sm:$0xff]
        %v1473 = vld [vmem:[%s7 + $0x18] sm:$0xff]
        %v1474 = vld [vmem:[%s7 + $0x20] sm:$0xff]
        %v1475 = vld [vmem:[%s7 + $0x28] sm:$0xff]
        %v1476 = vld [vmem:[%s7 + $0x30] sm:$0xff]
        %v1477 = vld [vmem:[%s7 + $0x38] sm:$0xff]
        %v1478 = vld [vmem:[%s7 + $0x40] sm:$0xff]
        %v1479 = vld [vmem:[%s7 + $0x48] sm:$0xff]
        %v1480 = vld [vmem:[%s7 + $0x50] sm:$0xff]
        %v1481 = vld [vmem:[%s7 + $0x58] sm:$0xff]
        %v1482 = vld [vmem:[%s7 + $0x60] sm:$0xff]
        %v1483 = vld [vmem:[%s7 + $0x68] sm:$0xff]
        %v1484 = vld [vmem:[%s7 + $0x70] sm:$0xff]
        %v1485 = vld [vmem:[%s7 + $0x78] sm:$0xff]
        %1487 = vset.pattern.permute.xlu0 0
        %1488 = vperm.xlu0 %1487, %v1470
        %v1489 = vpop.permute.xlu0 %1488
        %1492 = vset.pattern.permute.xlu0 0
        %1493 = vperm.xlu0 %1492, %v1471
        %v1494 = vpop.permute.xlu0 %1493
        %1497 = vset.pattern.permute.xlu0 0
        %1498 = vperm.xlu0 %1497, %v1472
        %v1499 = vpop.permute.xlu0 %1498
        %1502 = vset.pattern.permute.xlu0 0
        %1503 = vperm.xlu0 %1502, %v1473
        %v1504 = vpop.permute.xlu0 %1503
        %1507 = vset.pattern.permute.xlu0 0
        %1508 = vperm.xlu0 %1507, %v1474
        %v1509 = vpop.permute.xlu0 %1508
        %1512 = vset.pattern.permute.xlu0 0
        %1513 = vperm.xlu0 %1512, %v1475
        %v1514 = vpop.permute.xlu0 %1513
        %1517 = vset.pattern.permute.xlu0 0
        %1518 = vperm.xlu0 %1517, %v1476
        %v1519 = vpop.permute.xlu0 %1518
        %1522 = vset.pattern.permute.xlu0 0
        %1523 = vperm.xlu0 %1522, %v1477
        %v1524 = vpop.permute.xlu0 %1523
        %1527 = vset.pattern.permute.xlu0 0
        %1528 = vperm.xlu0 %1527, %v1478
        %v1529 = vpop.permute.xlu0 %1528
        %1532 = vset.pattern.permute.xlu0 0
        %1533 = vperm.xlu0 %1532, %v1479
        %v1534 = vpop.permute.xlu0 %1533
        %1537 = vset.pattern.permute.xlu0 0
        %1538 = vperm.xlu0 %1537, %v1480
        %v1539 = vpop.permute.xlu0 %1538
        %1542 = vset.pattern.permute.xlu0 0
        %1543 = vperm.xlu0 %1542, %v1481
        %v1544 = vpop.permute.xlu0 %1543
        %1547 = vset.pattern.permute.xlu0 0
        %1548 = vperm.xlu0 %1547, %v1482
        %v1549 = vpop.permute.xlu0 %1548
        %1552 = vset.pattern.permute.xlu0 0
        %1553 = vperm.xlu0 %1552, %v1483
        %v1554 = vpop.permute.xlu0 %1553
        %1557 = vset.pattern.permute.xlu0 0
        %1558 = vperm.xlu0 %1557, %v1484
        %v1559 = vpop.permute.xlu0 %1558
        %1562 = vset.pattern.permute.xlu0 0
        %1563 = vperm.xlu0 %1562, %v1485
        %v1564 = vpop.permute.xlu0 %1563
        %v1582 = vunpack.c.l.b16 %v1454
        %v1583 = vunpack.c.h.b16 %v1454
        %v1584 = vunpack.c.l.b16 %v1455
        %v1585 = vunpack.c.h.b16 %v1455
        %v1586 = vunpack.c.l.b16 %v1456
        %v1587 = vunpack.c.h.b16 %v1456
        %v1588 = vunpack.c.l.b16 %v1457
        %v1589 = vunpack.c.h.b16 %v1457
        %v1590 = vunpack.c.l.b16 %v1458
        %v1591 = vunpack.c.h.b16 %v1458
        %v1592 = vunpack.c.l.b16 %v1459
        %v1593 = vunpack.c.h.b16 %v1459
        %v1594 = vunpack.c.l.b16 %v1460
        %v1595 = vunpack.c.h.b16 %v1460
        %v1596 = vunpack.c.l.b16 %v1461
        %v1597 = vunpack.c.h.b16 %v1461
        %v1598 = vunpack.c.l.b16 %v1462
        %v1599 = vunpack.c.h.b16 %v1462
        %v1600 = vunpack.c.l.b16 %v1463
        %v1601 = vunpack.c.h.b16 %v1463
        %v1602 = vunpack.c.l.b16 %v1464
        %v1603 = vunpack.c.h.b16 %v1464
        %v1604 = vunpack.c.l.b16 %v1465
        %v1605 = vunpack.c.h.b16 %v1465
        %v1606 = vunpack.c.l.b16 %v1466
        %v1607 = vunpack.c.h.b16 %v1466
        %v1608 = vunpack.c.l.b16 %v1467
        %v1609 = vunpack.c.h.b16 %v1467
        %v1610 = vunpack.c.l.b16 %v1468
        %v1611 = vunpack.c.h.b16 %v1468
        %v1612 = vunpack.c.l.b16 %v1469
        %v1613 = vunpack.c.h.b16 %v1469
        %v1614 = vpack.c.b16 %v1584, %v1582
        %v1615 = vpack.c.b16 %v1585, %v1583
        %v1616 = vpack.c.b16 %v1588, %v1586
        %v1617 = vpack.c.b16 %v1589, %v1587
        %v1618 = vpack.c.b16 %v1592, %v1590
        %v1619 = vpack.c.b16 %v1593, %v1591
        %v1620 = vpack.c.b16 %v1596, %v1594
        %v1621 = vpack.c.b16 %v1597, %v1595
        %v1622 = vpack.c.b16 %v1600, %v1598
        %v1623 = vpack.c.b16 %v1601, %v1599
        %v1624 = vpack.c.b16 %v1604, %v1602
        %v1625 = vpack.c.b16 %v1605, %v1603
        %v1626 = vpack.c.b16 %v1608, %v1606
        %v1627 = vpack.c.b16 %v1609, %v1607
        %v1628 = vpack.c.b16 %v1612, %v1610
        %v1629 = vpack.c.b16 %v1613, %v1611
        %1646 = vmatprep.subr.bf16.mxu0 0
        %1647 = vmatpush1.bf16.msra.mxu0 %v1438
        %1648 = vmatprep.subr.bf16.mxu0 0
        %1649 = vmatpush1.bf16.msra.mxu0 %v1439
        %1650 = vmatprep.subr.bf16.mxu0 0
        %1651 = vmatpush1.bf16.msra.mxu0 %v1440
        %1652 = vmatprep.subr.bf16.mxu0 0
        %1653 = vmatpush1.bf16.msra.mxu0 %v1441
        %1654 = vmatprep.subr.bf16.mxu0 0
        %1655 = vmatpush1.bf16.msra.mxu0 %v1442
        %1656 = vmatprep.subr.bf16.mxu0 0
        %1657 = vmatpush1.bf16.msra.mxu0 %v1443
        %1658 = vmatprep.subr.bf16.mxu0 0
        %1659 = vmatpush1.bf16.msra.mxu0 %v1444
        %1660 = vmatprep.subr.bf16.mxu0 0
        %1661 = vmatpush1.bf16.msra.mxu0 %v1445
        %1662 = vmatprep.subr.bf16.mxu0 0
        %1663 = vmatpush1.bf16.msra.mxu0 %v1446
        %1664 = vmatprep.subr.bf16.mxu0 0
        %1665 = vmatpush1.bf16.msra.mxu0 %v1447
        %1666 = vmatprep.subr.bf16.mxu0 0
        %1667 = vmatpush1.bf16.msra.mxu0 %v1448
        %1668 = vmatprep.subr.bf16.mxu0 0
        %1669 = vmatpush1.bf16.msra.mxu0 %v1449
        %1670 = vmatprep.subr.bf16.mxu0 0
        %1671 = vmatpush1.bf16.msra.mxu0 %v1450
        %1672 = vmatprep.subr.bf16.mxu0 0
        %1673 = vmatpush1.bf16.msra.mxu0 %v1451
        %1674 = vmatprep.subr.bf16.mxu0 0
        %1675 = vmatpush1.bf16.msra.mxu0 %v1452
        %1676 = vmatprep.subr.bf16.mxu0 0
        %1677 = vmatpush1.bf16.msra.mxu0 %v1453
        %1678 = vmatprep.mubr.bf16.mxu0 %v1615
        %1679 = vmatmul.mubr.bf16.gmra.mrb[0].mxu0 %v1614
        %v1680 = vpop.f32.mrb[0].mxu0
        %v1681 = vadd.f32 %v1489, %v1680
        %v1682 = vpop.f32.mrb[0].mxu0
        %v1683 = vpop.f32.mrb[0].mxu0
        %v1684 = vadd.f32 %v1494, %v1683
        %v1685 = vpop.f32.mrb[0].mxu0
        %1686 = vmatprep.mubr.bf16.mxu0 %v1617
        %1687 = vmatmul.mubr.bf16.gmra.mrb[0].mxu0 %v1616
        %v1688 = vpop.f32.mrb[0].mxu0
        %v1689 = vadd.f32 %v1499, %v1688
        %v1690 = vpop.f32.mrb[0].mxu0
        %v1691 = vpop.f32.mrb[0].mxu0
        %v1692 = vadd.f32 %v1504, %v1691
        %v1693 = vpop.f32.mrb[0].mxu0
        %1694 = vmatprep.mubr.bf16.mxu0 %v1619
        %1695 = vmatmul.mubr.bf16.gmra.mrb[0].mxu0 %v1618
        %v1696 = vpop.f32.mrb[0].mxu0
        %v1697 = vadd.f32 %v1509, %v1696
        %v1698 = vpop.f32.mrb[0].mxu0
        %v1699 = vpop.f32.mrb[0].mxu0
        %v1700 = vadd.f32 %v1514, %v1699
        %v1701 = vpop.f32.mrb[0].mxu0
        %1702 = vmatprep.mubr.bf16.mxu0 %v1621
        %1703 = vmatmul.mubr.bf16.gmra.mrb[0].mxu0 %v1620
        %v1704 = vpop.f32.mrb[0].mxu0
        %v1705 = vadd.f32 %v1519, %v1704
        %v1706 = vpop.f32.mrb[0].mxu0
        %v1707 = vpop.f32.mrb[0].mxu0
        %v1708 = vadd.f32 %v1524, %v1707
        %v1709 = vpop.f32.mrb[0].mxu0
        %1710 = vmatprep.mubr.bf16.mxu0 %v1623
        %1711 = vmatmul.mubr.bf16.gmra.mrb[0].mxu0 %v1622
        %v1712 = vpop.f32.mrb[0].mxu0
        %v1713 = vadd.f32 %v1529, %v1712
        %v1714 = vpop.f32.mrb[0].mxu0
        %v1715 = vpop.f32.mrb[0].mxu0
        %v1716 = vadd.f32 %v1534, %v1715
        %v1717 = vpop.f32.mrb[0].mxu0
        %1718 = vmatprep.mubr.bf16.mxu0 %v1625
        %1719 = vmatmul.mubr.bf16.gmra.mrb[0].mxu0 %v1624
        %v1720 = vpop.f32.mrb[0].mxu0
        %v1721 = vadd.f32 %v1539, %v1720
        %v1722 = vpop.f32.mrb[0].mxu0
        %v1723 = vpop.f32.mrb[0].mxu0
        %v1724 = vadd.f32 %v1544, %v1723
        %v1725 = vpop.f32.mrb[0].mxu0
        %1726 = vmatprep.mubr.bf16.mxu0 %v1627
        %1727 = vmatmul.mubr.bf16.gmra.mrb[0].mxu0 %v1626
        %v1728 = vpop.f32.mrb[0].mxu0
        %v1729 = vadd.f32 %v1549, %v1728
        %v1730 = vpop.f32.mrb[0].mxu0
        %v1731 = vpop.f32.mrb[0].mxu0
        %v1732 = vadd.f32 %v1554, %v1731
        %v1733 = vpop.f32.mrb[0].mxu0
        %1734 = vmatprep.mubr.bf16.mxu0 %v1629
        %1735 = vmatmul.mubr.bf16.gmra.mrb[0].mxu0 %v1628
        %v1736 = vpop.f32.mrb[0].mxu0
        %v1737 = vadd.f32 %v1559, %v1736
        %v1738 = vpop.f32.mrb[0].mxu0
        %v1739 = vpop.f32.mrb[0].mxu0
        %v1740 = vadd.f32 %v1564, %v1739
        %v1741 = vpop.f32.mrb[0].mxu0
        %1742 = vdwg.mxu0
        %v1743 = vmax.f32 %v1681, 0.0
        %v1744 = vmax.f32 %v1684, 0.0
        %v1745 = vmax.f32 %v1689, 0.0
        %v1746 = vmax.f32 %v1692, 0.0
        %v1747 = vmax.f32 %v1697, 0.0
        %v1748 = vmax.f32 %v1700, 0.0
        %v1749 = vmax.f32 %v1705, 0.0
        %v1750 = vmax.f32 %v1708, 0.0
        %v1751 = vmax.f32 %v1713, 0.0
        %v1752 = vmax.f32 %v1716, 0.0
        %v1753 = vmax.f32 %v1721, 0.0
        %v1754 = vmax.f32 %v1724, 0.0
        %v1755 = vmax.f32 %v1729, 0.0
        %v1756 = vmax.f32 %v1732, 0.0
        %v1757 = vmax.f32 %v1737, 0.0
        %v1758 = vmax.f32 %v1740, 0.0
        %v1759 = vpack.c.bf16 %v1744, %v1743
        %v1760 = vpack.c.bf16 %v1746, %v1745
        %v1761 = vpack.c.bf16 %v1748, %v1747
        %v1762 = vpack.c.bf16 %v1750, %v1749
        %v1763 = vpack.c.bf16 %v1752, %v1751
        %v1764 = vpack.c.bf16 %v1754, %v1753
        %v1765 = vpack.c.bf16 %v1756, %v1755
        %v1766 = vpack.c.bf16 %v1758, %v1757
        %v1767 = vld [vmem:[%s3] sm:$0xf]
        %v1768 = vld [vmem:[%s3 + $0x4] sm:$0xf]
        %v1769 = vld [vmem:[%s3 + $0x8] sm:$0xf]
        %v1770 = vld [vmem:[%s3 + $0xc] sm:$0xf]
        %v1771 = vld [vmem:[%s8] sm:$0xff]
        %v1772 = vld [vmem:[%s8 + $0x8] sm:$0xff]
        %v1773 = vld [vmem:[%s8 + $0x10] sm:$0xff]
        %v1774 = vld [vmem:[%s8 + $0x18] sm:$0xff]
        %1776 = vset.pattern.permute.xlu0 0
        %1777 = vperm.xlu0 %1776, %v1771
        %v1778 = vpop.permute.xlu0 %1777
        %1781 = vset.pattern.permute.xlu0 0
        %1782 = vperm.xlu0 %1781, %v1772
        %v1783 = vpop.permute.xlu0 %1782
        %1786 = vset.pattern.permute.xlu0 0
        %1787 = vperm.xlu0 %1786, %v1773
        %v1788 = vpop.permute.xlu0 %1787
        %1791 = vset.pattern.permute.xlu0 0
        %1792 = vperm.xlu0 %1791, %v1774
        %v1793 = vpop.permute.xlu0 %1792
        %v1799 = vunpack.c.l.b16 %v1767
        %v1800 = vunpack.c.l.b16 %v1768
        %v1801 = vunpack.c.l.b16 %v1769
        %v1802 = vunpack.c.l.b16 %v1770
        %v1803 = vpack.c.b16 %v1800, %v1799
        %v1804 = vpack.c.b16 %v1802, %v1801
        %1807 = vmatprep.subr.bf16.mxu0 0
        %1808 = vmatpush1.bf16.msra.mxu0 %v1759
        %1809 = vmatprep.subr.bf16.mxu0 0
        %1810 = vmatpush1.bf16.msra.mxu0 %v1760
        %1811 = vmatprep.subr.bf16.mxu0 0
        %1812 = vmatpush1.bf16.msra.mxu0 %v1761
        %1813 = vmatprep.subr.bf16.mxu0 0
        %1814 = vmatpush1.bf16.msra.mxu0 %v1762
        %1815 = vmatprep.subr.bf16.mxu0 0
        %1816 = vmatpush1.bf16.msra.mxu0 %v1763
        %1817 = vmatprep.subr.bf16.mxu0 0
        %1818 = vmatpush1.bf16.msra.mxu0 %v1764
        %1819 = vmatprep.subr.bf16.mxu0 0
        %1820 = vmatpush1.bf16.msra.mxu0 %v1765
        %1821 = vmatprep.subr.bf16.mxu0 0
        %1822 = vmatpush1.bf16.msra.mxu0 %v1766
        %1823 = vmatprep.subr.bf16.mxu0 0
        %1824 = vmatpush1.bf16.msra.mxu0 0
        %1825 = vmatprep.subr.bf16.mxu0 0
        %1826 = vmatpush1.bf16.msra.mxu0 0
        %1827 = vmatprep.subr.bf16.mxu0 0
        %1828 = vmatpush1.bf16.msra.mxu0 0
        %1829 = vmatprep.subr.bf16.mxu0 0
        %1830 = vmatpush1.bf16.msra.mxu0 0
        %1831 = vmatprep.subr.bf16.mxu0 0
        %1832 = vmatpush1.bf16.msra.mxu0 0
        %1833 = vmatprep.subr.bf16.mxu0 0
        %1834 = vmatpush1.bf16.msra.mxu0 0
        %1835 = vmatprep.subr.bf16.mxu0 0
        %1836 = vmatpush1.bf16.msra.mxu0 0
        %1837 = vmatprep.subr.bf16.mxu0 0
        %1838 = vmatpush1.bf16.msra.mxu0 0
        %1839 = vmatprep.mubr.bf16.mxu0 0
        %1840 = vmatmul.mubr.bf16.gmra.mrb[0].mxu0 %v1803
        %v1841 = vpop.f32.mrb[0].mxu0
        %v1842 = vadd.f32 %v1778, %v1841
        %v1843 = vpop.f32.mrb[0].mxu0
        %v1844 = vpop.f32.mrb[0].mxu0
        %v1845 = vadd.f32 %v1783, %v1844
        %v1846 = vpop.f32.mrb[0].mxu0
        %1847 = vmatprep.mubr.bf16.mxu0 0
        %1848 = vmatmul.mubr.bf16.gmra.mrb[0].mxu0 %v1804
        %v1849 = vpop.f32.mrb[0].mxu0
        %v1850 = vadd.f32 %v1788, %v1849
        %v1851 = vpop.f32.mrb[0].mxu0
        %v1852 = vpop.f32.mrb[0].mxu0
        %v1853 = vadd.f32 %v1793, %v1852
        %v1854 = vpop.f32.mrb[0].mxu0
        %1855 = vdwg.mxu0
        %v1856 = vmax.f32 %v1842, 0.0
        %v1857 = vmax.f32 %v1845, 0.0
        %v1858 = vmax.f32 %v1850, 0.0
        %v1859 = vmax.f32 %v1853, 0.0
        %v1860 = vpack.c.bf16 %v1857, %v1856
        %v1861 = vpack.c.bf16 %v1859, %v1858
        %v1862 = vld [vmem:[%s4] sm:$0xf]
        %v1863 = vld [vmem:[%s9] sm:$0xff]
        %1865 = vset.pattern.permute.xlu0 0
        %1866 = vperm.xlu0 %1865, %v1863
        %v1867 = vpop.permute.xlu0 %1866
        %vm1869 = vcmask 261120
        %v1871 = vsel %vm1869, %v1862, 0
        %1873 = vmatprep.subr.bf16.mxu0 0
        %1874 = vmatpush1.bf16.msra.mxu0 %v1860
        %1875 = vmatprep.subr.bf16.mxu0 0
        %1876 = vmatpush1.bf16.msra.mxu0 %v1861
        %1877 = vmatprep.subr.bf16.mxu0 0
        %1878 = vmatpush1.bf16.msra.mxu0 0
        %1879 = vmatprep.subr.bf16.mxu0 0
        %1880 = vmatpush1.bf16.msra.mxu0 0
        %1881 = vmatprep.subr.bf16.mxu0 0
        %1882 = vmatpush1.bf16.msra.mxu0 0
        %1883 = vmatprep.subr.bf16.mxu0 0
        %1884 = vmatpush1.bf16.msra.mxu0 0
        %1885 = vmatprep.subr.bf16.mxu0 0
        %1886 = vmatpush1.bf16.msra.mxu0 0
        %1887 = vmatprep.subr.bf16.mxu0 0
        %1888 = vmatpush1.bf16.msra.mxu0 0
        %1889 = vmatprep.subr.bf16.mxu0 0
        %1890 = vmatpush1.bf16.msra.mxu0 0
        %1891 = vmatprep.subr.bf16.mxu0 0
        %1892 = vmatpush1.bf16.msra.mxu0 0
        %1893 = vmatprep.subr.bf16.mxu0 0
        %1894 = vmatpush1.bf16.msra.mxu0 0
        %1895 = vmatprep.subr.bf16.mxu0 0
        %1896 = vmatpush1.bf16.msra.mxu0 0
        %1897 = vmatprep.subr.bf16.mxu0 0
        %1898 = vmatpush1.bf16.msra.mxu0 0
        %1899 = vmatprep.subr.bf16.mxu0 0
        %1900 = vmatpush1.bf16.msra.mxu0 0
        %1901 = vmatprep.subr.bf16.mxu0 0
        %1902 = vmatpush1.bf16.msra.mxu0 0
        %1903 = vmatprep.subr.bf16.mxu0 0
        %1904 = vmatpush1.bf16.msra.mxu0 0
        %1905 = vmatprep.mubr.bf16.mxu0 0
        %1906 = vmatmul.mubr.bf16.gmra.mrb[0].mxu0 %v1871
        %v1907 = vpop.f32.mrb[0].mxu0
        %v1908 = vadd.f32 %v1867, %v1907
        %v1909 = vpop.f32.mrb[0].mxu0
        %v1910 = vpop.f32.mrb[0].mxu0
        %v1911 = vpop.f32.mrb[0].mxu0
        %1912 = vdwg.mxu0
        %v1913 = vmax.f32 %v1908, 0.0
        %v1914 = vpack.c.bf16 %v1913, %v1913
        %v1915 = vld [vmem:[%s5] sm:$0x1]
        %v1916 = vld [vmem:[#allocation2] sm:$0x1]
        %1918 = vset.pattern.permute.xlu0 0
        %1919 = vperm.xlu0 %1918, %v1916
        %v1920 = vpop.permute.xlu0 %1919
        %v1922 = vlaneseq
        %v1923 = vshrl.u32 %v1922, 7
        %v1924 = vsub.s32 0, %v1923
        %v1925 = vrot.slane %v1920, %v1924
        %vm1926 = vcmask 64512
        %v1928 = vsel %vm1926, %v1915, 0
        %vm1930 = vcmask 1043456
        %v1932 = vsel %vm1930, %v1914, 0
        %1934 = vmatprep.subr.bf16.mxu0 0
        %1935 = vmatpush1.bf16.msra.mxu0 %v1932
        %1936 = vmatprep.subr.bf16.mxu0 0
        %1937 = vmatpush1.bf16.msra.mxu0 0
        %1938 = vmatprep.subr.bf16.mxu0 0
        %1939 = vmatpush1.bf16.msra.mxu0 0
        %1940 = vmatprep.subr.bf16.mxu0 0
        %1941 = vmatpush1.bf16.msra.mxu0 0
        %1942 = vmatprep.subr.bf16.mxu0 0
        %1943 = vmatpush1.bf16.msra.mxu0 0
        %1944 = vmatprep.subr.bf16.mxu0 0
        %1945 = vmatpush1.bf16.msra.mxu0 0
        %1946 = vmatprep.subr.bf16.mxu0 0
        %1947 = vmatpush1.bf16.msra.mxu0 0
        %1948 = vmatprep.subr.bf16.mxu0 0
        %1949 = vmatpush1.bf16.msra.mxu0 0
        %1950 = vmatprep.subr.bf16.mxu0 0
        %1951 = vmatpush1.bf16.msra.mxu0 0
        %1952 = vmatprep.subr.bf16.mxu0 0
        %1953 = vmatpush1.bf16.msra.mxu0 0
        %1954 = vmatprep.subr.bf16.mxu0 0
        %1955 = vmatpush1.bf16.msra.mxu0 0
        %1956 = vmatprep.subr.bf16.mxu0 0
        %1957 = vmatpush1.bf16.msra.mxu0 0
        %1958 = vmatprep.subr.bf16.mxu0 0
        %1959 = vmatpush1.bf16.msra.mxu0 0
        %1960 = vmatprep.subr.bf16.mxu0 0
        %1961 = vmatpush1.bf16.msra.mxu0 0
        %1962 = vmatprep.subr.bf16.mxu0 0
        %1963 = vmatpush1.bf16.msra.mxu0 0
        %1964 = vmatprep.subr.bf16.mxu0 0
        %1965 = vmatpush1.bf16.msra.mxu0 0
        %1966 = vmatprep.mubr.bf16.mxu0 0
        %1967 = vmatmul.mubr.bf16.gmra.mrb[0].mxu0 %v1928
        %v1968 = vpop.f32.mrb[0].mxu0
        %v1969 = vadd.f32 %v1925, %v1968
        %v1970 = vpop.f32.mrb[0].mxu0
        %v1971 = vpop.f32.mrb[0].mxu0
        %v1972 = vpop.f32.mrb[0].mxu0
        %1973 = vdwg.mxu0
        %vm1974 = vcmask 647168
        %1975 = vst.msk [vmem:[%s402] sm:$0x1] %vm1974, %v1969
        %s1976 = sand.u32 %s287, 1
        %s1977 = scalar_lea.sflag [#allocation4], %s1976
        %s1978 = sand.u32 %s287, 1
        %s1979 = scalar_lea.vmem [#allocation3], %s1978
        // Predicated region
        $region65: #{tpu_custom_call.1} parent=63 // pred_check
          %p1980 = pneg %p297
        $region66: #{tpu_custom_call.1} parent=63 // pred_check_branch
          %1982 = sbr.rel (%p1980) target = $region68
        $region67: #{tpu_custom_call.1} parent=63 // pred_region
          %s1984 = ssub.s32 16, 16
          %1985 = vsyncadd %s1977, %s1984
          %s1986 = sadd.s32 %s32, %s31
          %s1987 = smul.addr %s1986, 16
          %s1988 = scalar_lea.hbm %s11, %s1987
          %s1990 = sshll.u32 %s1979, 4
          %s1991 = int_to_ptr.vmem [resolvable:$true] %s1990
          %1993 = dma.vmem_to_hbm [thread:$0]  %s1991, 16, %s1988, %s1977
        $region68: #{tpu_custom_call.1} parent=63 // pred_fallthru
          _
      $region64: #{tpu_custom_call.1} parent=5 // pred_fallthru
        _
      %p1994 = scmp.le.s32.totalorder 2, %s22
      // Predicated region
      $region69: #{tpu_custom_call.1} parent=5 // pred_check
        %p1995 = pneg %p1994
      $region70: #{tpu_custom_call.1} parent=5 // pred_check_branch
        %1997 = sbr.rel (%p1995) target = $region72
      $region71: #{tpu_custom_call.1} parent=5 // pred_region
        %s1998 = ssub.s32 %s22, 2
        // Predicated region
        $region73: #{tpu_custom_call.1} parent=71 // pred_check
          %p1999 = pneg %p303
        $region74: #{tpu_custom_call.1} parent=71 // pred_check_branch
          %2001 = sbr.rel (%p1999) target = $region76
        $region75: #{tpu_custom_call.1} parent=71 // pred_region
          %s2002 = sand.u32 %s288, 1
          %s2003 = scalar_lea.sflag [#allocation4], %s2002
          %s2004 = sand.u32 %s288, 1
          %s2005 = scalar_lea.vmem [#allocation3], %s2004
          %2006 = dma.done %s2003, 16
        $region76: #{tpu_custom_call.1} parent=71 // pred_fallthru
          _
      $region72: #{tpu_custom_call.1} parent=5 // pred_fallthru
        _
    $region6: #{tpu_custom_call.1} parent=1 // loop_footer
      %s26 = sadd.s32 1, %s22
    $region7: #{tpu_custom_call.1} parent=1 // loop_footer_branch
      %21 = sbr.rel target = $region3
    $region8: #{tpu_custom_call.1} parent=1 // loop_exit
      _
    %2007 = vsyncpa [#allocation4], 1
    %s2008 = scalar_lea.sflag [#allocation4], 1
    %2009 = vsyncpa %s2008, 1

</llo_original>
